<compile_context>
chip_gen: v6e
topology: v6e:2x2x1
jax: 0.10.0
libtpu: 0.0.40
codegen_flags: <defaults>
</compile_context>

<pallas_src>
import jax
import jax.numpy as jnp
from jax.experimental import pallas as pl
from jax.experimental.pallas import tpu as pltpu

D_IN = 784
Z_DIM = 2


def autoencoder_kernel(
    x_ref,                       # (TB, 784) f32  (cast to bf16 in-kernel)
    w1_ref, b1_ref,              # (784, 256) bf16, (1, 256) f32
    w2_ref, b2_ref,              # (256, 32)  bf16, (1, 32)  f32
    w3_ref, b3_ref,              # (32, 2)    bf16, (1, 2)   f32   (z head)
    w34_ref, b34_ref,            # (32, 32)   bf16, (1, 32)  f32   (fused w3 @ w4)
    w5_ref, b5_ref,              # (32, 256)  bf16, (1, 256) f32
    w6_ref, b6_ref,              # (256, 784) bf16, (1, 784) f32
    z_ref, out_ref,              # (TB, 2) f32, (TB, 784) bf16
):
    x = x_ref[...].astype(jnp.bfloat16)

    # ---------------- encoder ----------------
    h = jnp.dot(x, w1_ref[...], preferred_element_type=jnp.float32) + b1_ref[...]
    h = jnp.maximum(h, 0.0).astype(jnp.bfloat16)
    h = jnp.dot(h, w2_ref[...], preferred_element_type=jnp.float32) + b2_ref[...]
    h = jnp.maximum(h, 0.0).astype(jnp.bfloat16)

    # latent head (N=2, tiny) -> stored f32
    z_ref[...] = (jnp.dot(h, w3_ref[...], preferred_element_type=jnp.float32)
                  + b3_ref[...])

    # ---------------- decoder ----------------
    # First decoder layer fused with the (linear) latent projection: w34 = w3 @ w4,
    # b34 = b3 @ w4 + b4.  Exact algebraically; avoids the 2-deep contraction and
    # removes the z -> decoder dependency.
    d = jnp.dot(h, w34_ref[...], preferred_element_type=jnp.float32) + b34_ref[...]
    d = jnp.maximum(d, 0.0).astype(jnp.bfloat16)
    d = jnp.dot(d, w5_ref[...], preferred_element_type=jnp.float32) + b5_ref[...]
    d = jnp.maximum(d, 0.0).astype(jnp.bfloat16)
    d = jnp.dot(d, w6_ref[...], preferred_element_type=jnp.float32) + b6_ref[...]
    # bf16 store halves the dominant HBM stream; tanh in f32 is safe on all gens.
    out_ref[...] = jnp.tanh(d).astype(jnp.bfloat16)


def _choose_tiling(B):
    """Adaptive batch tile: bounded padding, >=2 (even) grid steps when possible."""
    TB_MAX = 512
    num_steps = -(-B // TB_MAX)              # ceil(B / 512)
    if B >= 16 and num_steps < 2:
        num_steps = 2                        # keep both v7x TensorCores busy
    if num_steps > 1 and num_steps % 2 == 1:
        num_steps += 1                       # even step count -> balanced TC split
    rows = -(-B // num_steps)                # ceil(B / num_steps)
    TB = -(-rows // 8) * 8                   # round up to a sublane multiple
    return TB, num_steps * TB


def prepack_params(params):
    """One-time weight packing/casting (hoisted out of the per-call forward)."""
    (w1, b1), (w2, b2), (w3, b3), (w4, b4), (w5, b5), (w6, b6) = params
    w34 = (w3.astype(jnp.float32) @ w4.astype(jnp.float32)).astype(jnp.bfloat16)
    b34 = (b3.astype(jnp.float32) @ w4.astype(jnp.float32)
           + b4.astype(jnp.float32))
    return (
        w1.astype(jnp.bfloat16), b1.astype(jnp.float32),
        w2.astype(jnp.bfloat16), b2.astype(jnp.float32),
        w3.astype(jnp.bfloat16), b3.astype(jnp.float32),
        w34, b34,
        w5.astype(jnp.bfloat16), b5.astype(jnp.float32),
        w6.astype(jnp.bfloat16), b6.astype(jnp.float32),
    )


@jax.jit
def autoencoder_forward(x, packed):
    """Returns (z: (B, 2) f32, x_rec: (B, 784) bf16)."""
    B = x.shape[0]
    TB, B_pad = _choose_tiling(B)

    xp = x
    if B_pad != B:
        xp = jnp.zeros((B_pad, D_IN), x.dtype).at[:B].set(x)

    # Weights/biases: full-extent blocks, constant index_map -> loaded once and
    # VMEM-resident across the whole batch grid.
    def const_spec(a):
        nd = a.ndim
        return pl.BlockSpec(a.shape, lambda i, _nd=nd: (0,) * _nd)

    in_specs = [pl.BlockSpec((TB, D_IN), lambda i: (i, 0))]
    in_specs += [const_spec(p) for p in packed]

    out_specs = (
        pl.BlockSpec((TB, Z_DIM), lambda i: (i, 0)),
        pl.BlockSpec((TB, D_IN), lambda i: (i, 0)),
    )
    out_shapes = (
        jax.ShapeDtypeStruct((B_pad, Z_DIM), jnp.float32),
        jax.ShapeDtypeStruct((B_pad, D_IN), jnp.bfloat16),
    )

    z, rec = pl.pallas_call(
        autoencoder_kernel,
        grid=(B_pad // TB,),
        in_specs=in_specs,
        out_specs=out_specs,
        out_shape=out_shapes,
        compiler_params=pltpu.CompilerParams(
            dimension_semantics=("parallel",),   # shard batch across v7x's 2 TCs
            vmem_limit_bytes=32 * 1024 * 1024,
        ),
    )(xp, *packed)

    if B_pad != B:
        z, rec = z[:B], rec[:B]
    return z, rec


def init_params(key):
    """Deterministic init matching nn.Linear shapes (weights stored as (in, out))."""
    dims = [(784, 256), (256, 32), (32, 2),    # encoder
            (2, 32), (32, 256), (256, 784)]    # decoder
    params = []
    for (fan_in, fan_out) in dims:
        key, kw, kb = jax.random.split(key, 3)
        bound = 1.0 / jnp.sqrt(jnp.float32(fan_in))
        w = jax.random.uniform(kw, (fan_in, fan_out), jnp.float32, -bound, bound)
        b = jax.random.uniform(kb, (1, fan_out), jnp.float32, -bound, bound)
        params.append((w, b))
    return params


def reference_forward(x, params):
    """Plain-JAX f32 reference for correctness check."""
    (w1, b1), (w2, b2), (w3, b3), (w4, b4), (w5, b5), (w6, b6) = params
    h = jnp.maximum(x @ w1 + b1, 0.0)
    h = jnp.maximum(h @ w2 + b2, 0.0)
    z = h @ w3 + b3
    d = jnp.maximum(z @ w4 + b4, 0.0)
    d = jnp.maximum(d @ w5 + b5, 0.0)
    x_rec = jnp.tanh(d @ w6 + b6)
    return z, x_rec


if __name__ == "__main__":
    key = jax.random.PRNGKey(0)
    key, kx1, kx2 = jax.random.split(key, 3)

    params = init_params(key)
    packed = prepack_params(params)

    # --- small single-step check ---
    B1 = 8
    x1 = jax.random.normal(kx1, (B1, D_IN), jnp.float32)
    z1, rec1 = autoencoder_forward(x1, packed)
    jax.block_until_ready((z1, rec1))
    z1_ref, rec1_ref = reference_forward(x1, params)
    assert z1.shape == (B1, Z_DIM) and rec1.shape == (B1, D_IN)
    # Tolerances account for bf16 inputs/weights on the MXU and the bf16 recon store.
    assert jnp.allclose(z1, z1_ref, atol=5e-2, rtol=5e-2)
    assert jnp.allclose(rec1.astype(jnp.float32), rec1_ref, atol=5e-2, rtol=5e-2)

    # --- multi-step grid + padded-batch check (exercises pipelining / 2-TC path) ---
    B2 = 300
    x2 = jax.random.normal(kx2, (B2, D_IN), jnp.float32)
    z2, rec2 = autoencoder_forward(x2, packed)
    jax.block_until_ready((z2, rec2))
    z2_ref, rec2_ref = reference_forward(x2, params)
    assert z2.shape == (B2, Z_DIM) and rec2.shape == (B2, D_IN)
    assert jnp.allclose(z2, z2_ref, atol=5e-2, rtol=5e-2)
    assert jnp.allclose(rec2.astype(jnp.float32), rec2_ref, atol=5e-2, rtol=5e-2)

    print("KERNEL_OK")
</pallas_src>

<mosaic_0001>
module attributes {stable_mosaic.version = 11 : i64} {
  func.func @autoencoder_kernel(%arg0: i32, %arg1: memref<8x784xf32, #tpu.memory_space<vmem>>, %arg2: memref<784x256xbf16, #tpu.memory_space<vmem>>, %arg3: memref<1x256xf32, #tpu.memory_space<vmem>>, %arg4: memref<256x32xbf16, #tpu.memory_space<vmem>>, %arg5: memref<1x32xf32, #tpu.memory_space<vmem>>, %arg6: memref<32x2xbf16, #tpu.memory_space<vmem>>, %arg7: memref<1x2xf32, #tpu.memory_space<vmem>>, %arg8: memref<32x32xbf16, #tpu.memory_space<vmem>>, %arg9: memref<1x32xf32, #tpu.memory_space<vmem>>, %arg10: memref<32x256xbf16, #tpu.memory_space<vmem>>, %arg11: memref<1x256xf32, #tpu.memory_space<vmem>>, %arg12: memref<256x784xbf16, #tpu.memory_space<vmem>>, %arg13: memref<1x784xf32, #tpu.memory_space<vmem>>, %arg14: memref<8x2xf32, #tpu.memory_space<vmem>>, %arg15: memref<8x784xbf16, #tpu.memory_space<vmem>>) attributes {dimension_semantics = [#tpu.dimension_semantics<parallel>], iteration_bounds = array<i64: 1>, scalar_prefetch = 0 : i64, scratch_operands = 0 : i64, tpu.core_type = #tpu.core_type<tc>, window_params = [{transform_indices = @transform_0, window_bounds = array<i64: 8, 784>}, {pipeline_mode = #tpu.pipeline_mode<synchronous>, transform_indices = @transform_1, window_bounds = array<i64: 784, 256>}, {pipeline_mode = #tpu.pipeline_mode<synchronous>, transform_indices = @transform_2, window_bounds = array<i64: 1, 256>}, {pipeline_mode = #tpu.pipeline_mode<synchronous>, transform_indices = @transform_3, window_bounds = array<i64: 256, 32>}, {pipeline_mode = #tpu.pipeline_mode<synchronous>, transform_indices = @transform_4, window_bounds = array<i64: 1, 32>}, {pipeline_mode = #tpu.pipeline_mode<synchronous>, transform_indices = @transform_5, window_bounds = array<i64: 32, 2>}, {pipeline_mode = #tpu.pipeline_mode<synchronous>, transform_indices = @transform_6, window_bounds = array<i64: 1, 2>}, {pipeline_mode = #tpu.pipeline_mode<synchronous>, transform_indices = @transform_7, window_bounds = array<i64: 32, 32>}, {pipeline_mode = #tpu.pipeline_mode<synchronous>, transform_indices = @transform_8, window_bounds = array<i64: 1, 32>}, {pipeline_mode = #tpu.pipeline_mode<synchronous>, transform_indices = @transform_9, window_bounds = array<i64: 32, 256>}, {pipeline_mode = #tpu.pipeline_mode<synchronous>, transform_indices = @transform_10, window_bounds = array<i64: 1, 256>}, {pipeline_mode = #tpu.pipeline_mode<synchronous>, transform_indices = @transform_11, window_bounds = array<i64: 256, 784>}, {pipeline_mode = #tpu.pipeline_mode<synchronous>, transform_indices = @transform_12, window_bounds = array<i64: 1, 784>}, {transform_indices = @transform_13, window_bounds = array<i64: 8, 2>}, {transform_indices = @transform_14, window_bounds = array<i64: 8, 784>}]} {
    %c0 = arith.constant 0 : index
    %c0_0 = arith.constant 0 : index
    %0 = vector.load %arg1[%c0, %c0_0] : memref<8x784xf32, #tpu.memory_space<vmem>>, vector<8x784xf32>
    %1 = arith.truncf %0 : vector<8x784xf32> to vector<8x784xbf16>
    %c0_1 = arith.constant 0 : index
    %c0_2 = arith.constant 0 : index
    %2 = vector.load %arg2[%c0_1, %c0_2] : memref<784x256xbf16, #tpu.memory_space<vmem>>, vector<784x256xbf16>
    %cst = arith.constant dense<0.000000e+00> : vector<8x256xf32>
    %3 = tpu.matmul %1, %2, %cst {dimension_numbers = #tpu.dot_dimension_numbers<[1], [0], [0], [1], [0, 0, 1, 1], [], []>} : vector<8x784xbf16>, vector<784x256xbf16>, vector<8x256xf32> -> vector<8x256xf32>
    %c0_3 = arith.constant 0 : index
    %c0_4 = arith.constant 0 : index
    %4 = vector.load %arg3[%c0_3, %c0_4] : memref<1x256xf32, #tpu.memory_space<vmem>>, vector<1x256xf32>
    %5 = vector.broadcast %4 : vector<1x256xf32> to vector<8x256xf32>
    %6 = arith.addf %3, %5 : vector<8x256xf32>
    %cst_5 = arith.constant 0.000000e+00 : f32
    %7 = vector.broadcast %cst_5 : f32 to vector<8x256xf32>
    %8 = arith.maximumf %6, %7 : vector<8x256xf32>
    %9 = arith.truncf %8 : vector<8x256xf32> to vector<8x256xbf16>
    %c0_6 = arith.constant 0 : index
    %c0_7 = arith.constant 0 : index
    %10 = vector.load %arg4[%c0_6, %c0_7] : memref<256x32xbf16, #tpu.memory_space<vmem>>, vector<256x32xbf16>
    %cst_8 = arith.constant dense<0.000000e+00> : vector<8x32xf32>
    %11 = tpu.matmul %9, %10, %cst_8 {dimension_numbers = #tpu.dot_dimension_numbers<[1], [0], [0], [1], [0, 0, 1, 1], [], []>} : vector<8x256xbf16>, vector<256x32xbf16>, vector<8x32xf32> -> vector<8x32xf32>
    %c0_9 = arith.constant 0 : index
    %c0_10 = arith.constant 0 : index
    %12 = vector.load %arg5[%c0_9, %c0_10] : memref<1x32xf32, #tpu.memory_space<vmem>>, vector<1x32xf32>
    %13 = vector.broadcast %12 : vector<1x32xf32> to vector<8x32xf32>
    %14 = arith.addf %11, %13 : vector<8x32xf32>
    %cst_11 = arith.constant 0.000000e+00 : f32
    %15 = vector.broadcast %cst_11 : f32 to vector<8x32xf32>
    %16 = arith.maximumf %14, %15 : vector<8x32xf32>
    %17 = arith.truncf %16 : vector<8x32xf32> to vector<8x32xbf16>
    %c0_12 = arith.constant 0 : index
    %c0_13 = arith.constant 0 : index
    %18 = vector.load %arg6[%c0_12, %c0_13] : memref<32x2xbf16, #tpu.memory_space<vmem>>, vector<32x2xbf16>
    %cst_14 = arith.constant dense<0.000000e+00> : vector<8x2xf32>
    %19 = tpu.matmul %17, %18, %cst_14 {dimension_numbers = #tpu.dot_dimension_numbers<[1], [0], [0], [1], [0, 0, 1, 1], [], []>} : vector<8x32xbf16>, vector<32x2xbf16>, vector<8x2xf32> -> vector<8x2xf32>
    %c0_15 = arith.constant 0 : index
    %c0_16 = arith.constant 0 : index
    %20 = vector.load %arg7[%c0_15, %c0_16] : memref<1x2xf32, #tpu.memory_space<vmem>>, vector<1x2xf32>
    %21 = vector.broadcast %20 : vector<1x2xf32> to vector<8x2xf32>
    %22 = arith.addf %19, %21 : vector<8x2xf32>
    %c0_17 = arith.constant 0 : index
    %c0_18 = arith.constant 0 : index
    %23 = vector.load %arg14[%c0_17, %c0_18] : memref<8x2xf32, #tpu.memory_space<vmem>>, vector<8x2xf32>
    tpu.vector_store %arg14[%c0_17, %c0_18], %22 {strides = array<i32>} : memref<8x2xf32, #tpu.memory_space<vmem>>, vector<8x2xf32>,
    %c0_19 = arith.constant 0 : index
    %c0_20 = arith.constant 0 : index
    %24 = vector.load %arg8[%c0_19, %c0_20] : memref<32x32xbf16, #tpu.memory_space<vmem>>, vector<32x32xbf16>
    %cst_21 = arith.constant dense<0.000000e+00> : vector<8x32xf32>
    %25 = tpu.matmul %17, %24, %cst_21 {dimension_numbers = #tpu.dot_dimension_numbers<[1], [0], [0], [1], [0, 0, 1, 1], [], []>} : vector<8x32xbf16>, vector<32x32xbf16>, vector<8x32xf32> -> vector<8x32xf32>
    %c0_22 = arith.constant 0 : index
    %c0_23 = arith.constant 0 : index
    %26 = vector.load %arg9[%c0_22, %c0_23] : memref<1x32xf32, #tpu.memory_space<vmem>>, vector<1x32xf32>
    %27 = vector.broadcast %26 : vector<1x32xf32> to vector<8x32xf32>
    %28 = arith.addf %25, %27 : vector<8x32xf32>
    %cst_24 = arith.constant 0.000000e+00 : f32
    %29 = vector.broadcast %cst_24 : f32 to vector<8x32xf32>
    %30 = arith.maximumf %28, %29 : vector<8x32xf32>
    %31 = arith.truncf %30 : vector<8x32xf32> to vector<8x32xbf16>
    %c0_25 = arith.constant 0 : index
    %c0_26 = arith.constant 0 : index
    %32 = vector.load %arg10[%c0_25, %c0_26] : memref<32x256xbf16, #tpu.memory_space<vmem>>, vector<32x256xbf16>
    %cst_27 = arith.constant dense<0.000000e+00> : vector<8x256xf32>
    %33 = tpu.matmul %31, %32, %cst_27 {dimension_numbers = #tpu.dot_dimension_numbers<[1], [0], [0], [1], [0, 0, 1, 1], [], []>} : vector<8x32xbf16>, vector<32x256xbf16>, vector<8x256xf32> -> vector<8x256xf32>
    %c0_28 = arith.constant 0 : index
    %c0_29 = arith.constant 0 : index
    %34 = vector.load %arg11[%c0_28, %c0_29] : memref<1x256xf32, #tpu.memory_space<vmem>>, vector<1x256xf32>
    %35 = vector.broadcast %34 : vector<1x256xf32> to vector<8x256xf32>
    %36 = arith.addf %33, %35 : vector<8x256xf32>
    %cst_30 = arith.constant 0.000000e+00 : f32
    %37 = vector.broadcast %cst_30 : f32 to vector<8x256xf32>
    %38 = arith.maximumf %36, %37 : vector<8x256xf32>
    %39 = arith.truncf %38 : vector<8x256xf32> to vector<8x256xbf16>
    %c0_31 = arith.constant 0 : index
    %c0_32 = arith.constant 0 : index
    %40 = vector.load %arg12[%c0_31, %c0_32] : memref<256x784xbf16, #tpu.memory_space<vmem>>, vector<256x784xbf16>
    %cst_33 = arith.constant dense<0.000000e+00> : vector<8x784xf32>
    %41 = tpu.matmul %39, %40, %cst_33 {dimension_numbers = #tpu.dot_dimension_numbers<[1], [0], [0], [1], [0, 0, 1, 1], [], []>} : vector<8x256xbf16>, vector<256x784xbf16>, vector<8x784xf32> -> vector<8x784xf32>
    %c0_34 = arith.constant 0 : index
    %c0_35 = arith.constant 0 : index
    %42 = vector.load %arg13[%c0_34, %c0_35] : memref<1x784xf32, #tpu.memory_space<vmem>>, vector<1x784xf32>
    %43 = vector.broadcast %42 : vector<1x784xf32> to vector<8x784xf32>
    %44 = arith.addf %41, %43 : vector<8x784xf32>
    %45 = math.tanh %44 : vector<8x784xf32>
    %46 = arith.truncf %45 : vector<8x784xf32> to vector<8x784xbf16>
    %c0_36 = arith.constant 0 : index
    %c0_37 = arith.constant 0 : index
    %47 = vector.load %arg15[%c0_36, %c0_37] : memref<8x784xbf16, #tpu.memory_space<vmem>>, vector<8x784xbf16>
    tpu.vector_store %arg15[%c0_36, %c0_37], %46 {strides = array<i32>} : memref<8x784xbf16, #tpu.memory_space<vmem>>, vector<8x784xbf16>,
    return
  }
  func.func @transform_0(%arg0: i32) -> (i32, i32) {
    %c0_i32 = arith.constant 0 : i32
    %c0_i32_0 = arith.constant 0 : i32
    return %arg0, %c0_i32 : i32, i32
  }
  func.func @transform_1(%arg0: i32) -> (i32, i32) {
    %c0_i32 = arith.constant 0 : i32
    %c0_i32_0 = arith.constant 0 : i32
    %c0_i32_1 = arith.constant 0 : i32
    return %c0_i32, %c0_i32_0 : i32, i32
  }
  func.func @transform_2(%arg0: i32) -> (i32, i32) {
    %c0_i32 = arith.constant 0 : i32
    %c0_i32_0 = arith.constant 0 : i32
    %c0_i32_1 = arith.constant 0 : i32
    return %c0_i32, %c0_i32_0 : i32, i32
  }
  func.func @transform_3(%arg0: i32) -> (i32, i32) {
    %c0_i32 = arith.constant 0 : i32
    %c0_i32_0 = arith.constant 0 : i32
    %c0_i32_1 = arith.constant 0 : i32
    return %c0_i32, %c0_i32_0 : i32, i32
  }
  func.func @transform_4(%arg0: i32) -> (i32, i32) {
    %c0_i32 = arith.constant 0 : i32
    %c0_i32_0 = arith.constant 0 : i32
    %c0_i32_1 = arith.constant 0 : i32
    return %c0_i32, %c0_i32_0 : i32, i32
  }
  func.func @transform_5(%arg0: i32) -> (i32, i32) {
    %c0_i32 = arith.constant 0 : i32
    %c0_i32_0 = arith.constant 0 : i32
    %c0_i32_1 = arith.constant 0 : i32
    return %c0_i32, %c0_i32_0 : i32, i32
  }
  func.func @transform_6(%arg0: i32) -> (i32, i32) {
    %c0_i32 = arith.constant 0 : i32
    %c0_i32_0 = arith.constant 0 : i32
    %c0_i32_1 = arith.constant 0 : i32
    return %c0_i32, %c0_i32_0 : i32, i32
  }
  func.func @transform_7(%arg0: i32) -> (i32, i32) {
    %c0_i32 = arith.constant 0 : i32
    %c0_i32_0 = arith.constant 0 : i32
    %c0_i32_1 = arith.constant 0 : i32
    return %c0_i32, %c0_i32_0 : i32, i32
  }
  func.func @transform_8(%arg0: i32) -> (i32, i32) {
    %c0_i32 = arith.constant 0 : i32
    %c0_i32_0 = arith.constant 0 : i32
    %c0_i32_1 = arith.constant 0 : i32
    return %c0_i32, %c0_i32_0 : i32, i32
  }
  func.func @transform_9(%arg0: i32) -> (i32, i32) {
    %c0_i32 = arith.constant 0 : i32
    %c0_i32_0 = arith.constant 0 : i32
    %c0_i32_1 = arith.constant 0 : i32
    return %c0_i32, %c0_i32_0 : i32, i32
  }
  func.func @transform_10(%arg0: i32) -> (i32, i32) {
    %c0_i32 = arith.constant 0 : i32
    %c0_i32_0 = arith.constant 0 : i32
    %c0_i32_1 = arith.constant 0 : i32
    return %c0_i32, %c0_i32_0 : i32, i32
  }
  func.func @transform_11(%arg0: i32) -> (i32, i32) {
    %c0_i32 = arith.constant 0 : i32
    %c0_i32_0 = arith.constant 0 : i32
    %c0_i32_1 = arith.constant 0 : i32
    return %c0_i32, %c0_i32_0 : i32, i32
  }
  func.func @transform_12(%arg0: i32) -> (i32, i32) {
    %c0_i32 = arith.constant 0 : i32
    %c0_i32_0 = arith.constant 0 : i32
    %c0_i32_1 = arith.constant 0 : i32
    return %c0_i32, %c0_i32_0 : i32, i32
  }
  func.func @transform_13(%arg0: i32) -> (i32, i32) {
    %c0_i32 = arith.constant 0 : i32
    %c0_i32_0 = arith.constant 0 : i32
    return %arg0, %c0_i32 : i32, i32
  }
  func.func @transform_14(%arg0: i32) -> (i32, i32) {
    %c0_i32 = arith.constant 0 : i32
    %c0_i32_0 = arith.constant 0 : i32
    return %arg0, %c0_i32 : i32, i32
  }
}

</mosaic_0001>

<llo_original>
// kernel: autoencoder_forward.1
$region0: #{autoencoder_forward.1}
  #allocation0 [shape = 'u32[]', space=smem, size = 0x4, offset = 0x4, fixed_abs, tag = 'smem constant byte address 0x4 - core index']
  #allocation1 [shape = 'u32[144,128]{1,0:T(1,128)}', space=vmem, size = 0x12000, scoped, tag = 'internal scratch']
  %s0 = inlined_call_operand.vmem [shape: f32[8,784], index: 0, kind: input, shape index: {}]
  %s1 = inlined_call_operand.vmem [shape: bf16[784,256], index: 1, kind: input, shape index: {}]
  %s2 = inlined_call_operand.vmem [shape: f32[1,256], index: 2, kind: input, shape index: {}]
  %s3 = inlined_call_operand.vmem [shape: bf16[256,32], index: 3, kind: input, shape index: {}]
  %s4 = inlined_call_operand.vmem [shape: f32[1,32], index: 4, kind: input, shape index: {}]
  %s5 = inlined_call_operand.vmem [shape: bf16[32,2], index: 5, kind: input, shape index: {}]
  %s6 = inlined_call_operand.vmem [shape: f32[1,2], index: 6, kind: input, shape index: {}]
  %s7 = inlined_call_operand.vmem [shape: bf16[32,32], index: 7, kind: input, shape index: {}]
  %s8 = inlined_call_operand.vmem [shape: f32[1,32], index: 8, kind: input, shape index: {}]
  %s9 = inlined_call_operand.vmem [shape: bf16[32,256], index: 9, kind: input, shape index: {}]
  %s10 = inlined_call_operand.vmem [shape: f32[1,256], index: 10, kind: input, shape index: {}]
  %s11 = inlined_call_operand.vmem [shape: bf16[256,784], index: 11, kind: input, shape index: {}]
  %s12 = inlined_call_operand.vmem [shape: f32[1,784], index: 12, kind: input, shape index: {}]
  %s13 = inlined_call_operand.vmem [shape: f32[8,2], index: 13, kind: output, shape index: {0}]
  %s14 = inlined_call_operand.hbm [shape: bf16[8,784], index: 14, kind: output, shape index: {1}]
  %15 = xla_tuple %s13, %s14
  %s16 = sld [smem:[#allocation0]]
  $region70: #{autoencoder_forward.1} parent=0
    _
  %s18 = ssub.s32 1, %s16
  %s19 = scalar_select 0, %s18, %s16
  $region1: #{autoencoder_forward.1} parent=0
    #allocation2 [shape = 'u8[14336]{0}', space=vmem, size = 0x3800, scoped, tag = 'output window, operand 1, single buffered']
    #allocation3 [shape = 's32[1]{0}', space=sflag, size = 0x4, scoped, tag = 'scoped memory for autoencoder_forward.1']
    %20 = vsyncpa [#allocation3], 0
    // Predicated region
    $region2: #{autoencoder_forward.1} parent=1 // pred_check
      _
    $region3: #{autoencoder_forward.1} parent=1 // pred_check_branch
      %22 = sbr.rel (0) target = $region5
    $region4: #{autoencoder_forward.1} parent=1 // pred_region
      _
    $region5: #{autoencoder_forward.1} parent=1 // pred_fallthru
      _
    // Predicated region
    $region6: #{autoencoder_forward.1} parent=1 // pred_check
      _
    $region7: #{autoencoder_forward.1} parent=1 // pred_check_branch
      %24 = sbr.rel (0) target = $region9
    $region8: #{autoencoder_forward.1} parent=1 // pred_region
      _
    $region9: #{autoencoder_forward.1} parent=1 // pred_fallthru
      _
    // Predicated region
    $region10: #{autoencoder_forward.1} parent=1 // pred_check
      _
    $region11: #{autoencoder_forward.1} parent=1 // pred_check_branch
      %26 = sbr.rel (0) target = $region13
    $region12: #{autoencoder_forward.1} parent=1 // pred_region
      _
    $region13: #{autoencoder_forward.1} parent=1 // pred_fallthru
      _
    // Predicated region
    $region14: #{autoencoder_forward.1} parent=1 // pred_check
      _
    $region15: #{autoencoder_forward.1} parent=1 // pred_check_branch
      %28 = sbr.rel (0) target = $region17
    $region16: #{autoencoder_forward.1} parent=1 // pred_region
      _
    $region17: #{autoencoder_forward.1} parent=1 // pred_fallthru
      _
    // Predicated region
    $region18: #{autoencoder_forward.1} parent=1 // pred_check
      _
    $region19: #{autoencoder_forward.1} parent=1 // pred_check_branch
      %30 = sbr.rel (0) target = $region21
    $region20: #{autoencoder_forward.1} parent=1 // pred_region
      _
    $region21: #{autoencoder_forward.1} parent=1 // pred_fallthru
      _
    // Predicated region
    $region22: #{autoencoder_forward.1} parent=1 // pred_check
      _
    $region23: #{autoencoder_forward.1} parent=1 // pred_check_branch
      %32 = sbr.rel (0) target = $region25
    $region24: #{autoencoder_forward.1} parent=1 // pred_region
      _
    $region25: #{autoencoder_forward.1} parent=1 // pred_fallthru
      _
    // Predicated region
    $region26: #{autoencoder_forward.1} parent=1 // pred_check
      _
    $region27: #{autoencoder_forward.1} parent=1 // pred_check_branch
      %34 = sbr.rel (0) target = $region29
    $region28: #{autoencoder_forward.1} parent=1 // pred_region
      _
    $region29: #{autoencoder_forward.1} parent=1 // pred_fallthru
      _
    // Predicated region
    $region30: #{autoencoder_forward.1} parent=1 // pred_check
      _
    $region31: #{autoencoder_forward.1} parent=1 // pred_check_branch
      %36 = sbr.rel (0) target = $region33
    $region32: #{autoencoder_forward.1} parent=1 // pred_region
      _
    $region33: #{autoencoder_forward.1} parent=1 // pred_fallthru
      _
    // Predicated region
    $region34: #{autoencoder_forward.1} parent=1 // pred_check
      _
    $region35: #{autoencoder_forward.1} parent=1 // pred_check_branch
      %38 = sbr.rel (0) target = $region37
    $region36: #{autoencoder_forward.1} parent=1 // pred_region
      _
    $region37: #{autoencoder_forward.1} parent=1 // pred_fallthru
      _
    // Predicated region
    $region38: #{autoencoder_forward.1} parent=1 // pred_check
      _
    $region39: #{autoencoder_forward.1} parent=1 // pred_check_branch
      %40 = sbr.rel (0) target = $region41
    $region40: #{autoencoder_forward.1} parent=1 // pred_region
      _
    $region41: #{autoencoder_forward.1} parent=1 // pred_fallthru
      _
    // Predicated region
    $region42: #{autoencoder_forward.1} parent=1 // pred_check
      _
    $region43: #{autoencoder_forward.1} parent=1 // pred_check_branch
      %42 = sbr.rel (0) target = $region45
    $region44: #{autoencoder_forward.1} parent=1 // pred_region
      _
    $region45: #{autoencoder_forward.1} parent=1 // pred_fallthru
      _
    // Predicated region
    $region46: #{autoencoder_forward.1} parent=1 // pred_check
      _
    $region47: #{autoencoder_forward.1} parent=1 // pred_check_branch
      %44 = sbr.rel (0) target = $region49
    $region48: #{autoencoder_forward.1} parent=1 // pred_region
      _
    $region49: #{autoencoder_forward.1} parent=1 // pred_fallthru
      _
    // Predicated region
    $region50: #{autoencoder_forward.1} parent=1 // pred_check
      _
    $region51: #{autoencoder_forward.1} parent=1 // pred_check_branch
      %46 = sbr.rel (0) target = $region53
    $region52: #{autoencoder_forward.1} parent=1 // pred_region
      _
    $region53: #{autoencoder_forward.1} parent=1 // pred_fallthru
      _
    %v48 = vld [vmem:[%s0] sm:$0xff]
    %v49 = vld [vmem:[%s0 + $0x8] sm:$0xff]
    %v50 = vld [vmem:[%s0 + $0x10] sm:$0xff]
    %v51 = vld [vmem:[%s0 + $0x18] sm:$0xff]
    %v52 = vld [vmem:[%s0 + $0x20] sm:$0xff]
    %v53 = vld [vmem:[%s0 + $0x28] sm:$0xff]
    %v54 = vld [vmem:[%s0 + $0x30] sm:$0xff]
    %v55 = vpack.c.bf16 %v48, %v48
    %v56 = vpack.c.bf16 %v49, %v49
    %v57 = vpack.c.bf16 %v50, %v50
    %v58 = vpack.c.bf16 %v51, %v51
    %v59 = vpack.c.bf16 %v52, %v52
    %v60 = vpack.c.bf16 %v53, %v53
    %v61 = vpack.c.bf16 %v54, %v54
    %v62 = vld [vmem:[%s1] sm:$0xff]
    %v63 = vld [vmem:[%s1 + $0x8] sm:$0xff]
    %v64 = vld [vmem:[%s1 + $0x10] sm:$0xff]
    %v65 = vld [vmem:[%s1 + $0x18] sm:$0xff]
    %v66 = vld [vmem:[%s1 + $0x20] sm:$0xff]
    %v67 = vld [vmem:[%s1 + $0x28] sm:$0xff]
    %v68 = vld [vmem:[%s1 + $0x30] sm:$0xff]
    %v69 = vld [vmem:[%s1 + $0x38] sm:$0xff]
    %v70 = vld [vmem:[%s1 + $0x40] sm:$0xff]
    %v71 = vld [vmem:[%s1 + $0x48] sm:$0xff]
    %v72 = vld [vmem:[%s1 + $0x50] sm:$0xff]
    %v73 = vld [vmem:[%s1 + $0x58] sm:$0xff]
    %v74 = vld [vmem:[%s1 + $0x60] sm:$0xff]
    %v75 = vld [vmem:[%s1 + $0x68] sm:$0xff]
    %v76 = vld [vmem:[%s1 + $0x70] sm:$0xff]
    %v77 = vld [vmem:[%s1 + $0x78] sm:$0xff]
    %v78 = vld [vmem:[%s1 + $0x80] sm:$0xff]
    %v79 = vld [vmem:[%s1 + $0x88] sm:$0xff]
    %v80 = vld [vmem:[%s1 + $0x90] sm:$0xff]
    %v81 = vld [vmem:[%s1 + $0x98] sm:$0xff]
    %v82 = vld [vmem:[%s1 + $0xa0] sm:$0xff]
    %v83 = vld [vmem:[%s1 + $0xa8] sm:$0xff]
    %v84 = vld [vmem:[%s1 + $0xb0] sm:$0xff]
    %v85 = vld [vmem:[%s1 + $0xb8] sm:$0xff]
    %v86 = vld [vmem:[%s1 + $0xc0] sm:$0xff]
    %v87 = vld [vmem:[%s1 + $0xc8] sm:$0xff]
    %v88 = vld [vmem:[%s1 + $0xd0] sm:$0xff]
    %v89 = vld [vmem:[%s1 + $0xd8] sm:$0xff]
    %v90 = vld [vmem:[%s1 + $0xe0] sm:$0xff]
    %v91 = vld [vmem:[%s1 + $0xe8] sm:$0xff]
    %v92 = vld [vmem:[%s1 + $0xf0] sm:$0xff]
    %v93 = vld [vmem:[%s1 + $0xf8] sm:$0xff]
    %v94 = vld [vmem:[%s1 + $0x100] sm:$0xff]
    %v95 = vld [vmem:[%s1 + $0x108] sm:$0xff]
    %v96 = vld [vmem:[%s1 + $0x110] sm:$0xff]
    %v97 = vld [vmem:[%s1 + $0x118] sm:$0xff]
    %v98 = vld [vmem:[%s1 + $0x120] sm:$0xff]
    %v99 = vld [vmem:[%s1 + $0x128] sm:$0xff]
    %v100 = vld [vmem:[%s1 + $0x130] sm:$0xff]
    %v101 = vld [vmem:[%s1 + $0x138] sm:$0xff]
    %v102 = vld [vmem:[%s1 + $0x140] sm:$0xff]
    %v103 = vld [vmem:[%s1 + $0x148] sm:$0xff]
    %v104 = vld [vmem:[%s1 + $0x150] sm:$0xff]
    %v105 = vld [vmem:[%s1 + $0x158] sm:$0xff]
    %v106 = vld [vmem:[%s1 + $0x160] sm:$0xff]
    %v107 = vld [vmem:[%s1 + $0x168] sm:$0xff]
    %v108 = vld [vmem:[%s1 + $0x170] sm:$0xff]
    %v109 = vld [vmem:[%s1 + $0x178] sm:$0xff]
    %v110 = vld [vmem:[%s1 + $0x180] sm:$0xff]
    %v111 = vld [vmem:[%s1 + $0x188] sm:$0xff]
    %v112 = vld [vmem:[%s1 + $0x190] sm:$0xff]
    %v113 = vld [vmem:[%s1 + $0x198] sm:$0xff]
    %v114 = vld [vmem:[%s1 + $0x1a0] sm:$0xff]
    %v115 = vld [vmem:[%s1 + $0x1a8] sm:$0xff]
    %v116 = vld [vmem:[%s1 + $0x1b0] sm:$0xff]
    %v117 = vld [vmem:[%s1 + $0x1b8] sm:$0xff]
    %v118 = vld [vmem:[%s1 + $0x1c0] sm:$0xff]
    %v119 = vld [vmem:[%s1 + $0x1c8] sm:$0xff]
    %v120 = vld [vmem:[%s1 + $0x1d0] sm:$0xff]
    %v121 = vld [vmem:[%s1 + $0x1d8] sm:$0xff]
    %v122 = vld [vmem:[%s1 + $0x1e0] sm:$0xff]
    %v123 = vld [vmem:[%s1 + $0x1e8] sm:$0xff]
    %v124 = vld [vmem:[%s1 + $0x1f0] sm:$0xff]
    %v125 = vld [vmem:[%s1 + $0x1f8] sm:$0xff]
    %v126 = vld [vmem:[%s1 + $0x200] sm:$0xff]
    %v127 = vld [vmem:[%s1 + $0x208] sm:$0xff]
    %v128 = vld [vmem:[%s1 + $0x210] sm:$0xff]
    %v129 = vld [vmem:[%s1 + $0x218] sm:$0xff]
    %v130 = vld [vmem:[%s1 + $0x220] sm:$0xff]
    %v131 = vld [vmem:[%s1 + $0x228] sm:$0xff]
    %v132 = vld [vmem:[%s1 + $0x230] sm:$0xff]
    %v133 = vld [vmem:[%s1 + $0x238] sm:$0xff]
    %v134 = vld [vmem:[%s1 + $0x240] sm:$0xff]
    %v135 = vld [vmem:[%s1 + $0x248] sm:$0xff]
    %v136 = vld [vmem:[%s1 + $0x250] sm:$0xff]
    %v137 = vld [vmem:[%s1 + $0x258] sm:$0xff]
    %v138 = vld [vmem:[%s1 + $0x260] sm:$0xff]
    %v139 = vld [vmem:[%s1 + $0x268] sm:$0xff]
    %v140 = vld [vmem:[%s1 + $0x270] sm:$0xff]
    %v141 = vld [vmem:[%s1 + $0x278] sm:$0xff]
    %v142 = vld [vmem:[%s1 + $0x280] sm:$0xff]
    %v143 = vld [vmem:[%s1 + $0x288] sm:$0xff]
    %v144 = vld [vmem:[%s1 + $0x290] sm:$0xff]
    %v145 = vld [vmem:[%s1 + $0x298] sm:$0xff]
    %v146 = vld [vmem:[%s1 + $0x2a0] sm:$0xff]
    %v147 = vld [vmem:[%s1 + $0x2a8] sm:$0xff]
    %v148 = vld [vmem:[%s1 + $0x2b0] sm:$0xff]
    %v149 = vld [vmem:[%s1 + $0x2b8] sm:$0xff]
    %v150 = vld [vmem:[%s1 + $0x2c0] sm:$0xff]
    %v151 = vld [vmem:[%s1 + $0x2c8] sm:$0xff]
    %v152 = vld [vmem:[%s1 + $0x2d0] sm:$0xff]
    %v153 = vld [vmem:[%s1 + $0x2d8] sm:$0xff]
    %v154 = vld [vmem:[%s1 + $0x2e0] sm:$0xff]
    %v155 = vld [vmem:[%s1 + $0x2e8] sm:$0xff]
    %v156 = vld [vmem:[%s1 + $0x2f0] sm:$0xff]
    %v157 = vld [vmem:[%s1 + $0x2f8] sm:$0xff]
    %v158 = vld [vmem:[%s1 + $0x300] sm:$0xff]
    %v159 = vld [vmem:[%s1 + $0x308] sm:$0xff]
    %v160 = vld [vmem:[%s2] sm:$0x3]
    %v162 = vlaneseq
    %v163 = vshrl.u32 %v162, 7
    %v164 = vsub.s32 0, %v163
    %v165 = vrot.slane %v160, %v164
    %v166 = vlaneseq
    %v167 = vshrl.u32 %v166, 7
    %v168 = vsub.s32 1, %v167
    %v169 = vrot.slane %v160, %v168
    %v270 = vunpack.c.l.b16 %v62
    %v271 = vunpack.c.h.b16 %v62
    %v272 = vunpack.c.l.b16 %v63
    %v273 = vunpack.c.h.b16 %v63
    %v274 = vunpack.c.l.b16 %v64
    %v275 = vunpack.c.h.b16 %v64
    %v276 = vunpack.c.l.b16 %v65
    %v277 = vunpack.c.h.b16 %v65
    %v278 = vunpack.c.l.b16 %v66
    %v279 = vunpack.c.h.b16 %v66
    %v280 = vunpack.c.l.b16 %v67
    %v281 = vunpack.c.h.b16 %v67
    %v282 = vunpack.c.l.b16 %v68
    %v283 = vunpack.c.h.b16 %v68
    %v284 = vunpack.c.l.b16 %v69
    %v285 = vunpack.c.h.b16 %v69
    %v286 = vunpack.c.l.b16 %v70
    %v287 = vunpack.c.h.b16 %v70
    %v288 = vunpack.c.l.b16 %v71
    %v289 = vunpack.c.h.b16 %v71
    %v290 = vunpack.c.l.b16 %v72
    %v291 = vunpack.c.h.b16 %v72
    %v292 = vunpack.c.l.b16 %v73
    %v293 = vunpack.c.h.b16 %v73
    %v294 = vunpack.c.l.b16 %v74
    %v295 = vunpack.c.h.b16 %v74
    %v296 = vunpack.c.l.b16 %v75
    %v297 = vunpack.c.h.b16 %v75
    %v298 = vunpack.c.l.b16 %v76
    %v299 = vunpack.c.h.b16 %v76
    %v300 = vunpack.c.l.b16 %v77
    %v301 = vunpack.c.h.b16 %v77
    %v302 = vunpack.c.l.b16 %v78
    %v303 = vunpack.c.h.b16 %v78
    %v304 = vunpack.c.l.b16 %v79
    %v305 = vunpack.c.h.b16 %v79
    %v306 = vunpack.c.l.b16 %v80
    %v307 = vunpack.c.h.b16 %v80
    %v308 = vunpack.c.l.b16 %v81
    %v309 = vunpack.c.h.b16 %v81
    %v310 = vunpack.c.l.b16 %v82
    %v311 = vunpack.c.h.b16 %v82
    %v312 = vunpack.c.l.b16 %v83
    %v313 = vunpack.c.h.b16 %v83
    %v314 = vunpack.c.l.b16 %v84
    %v315 = vunpack.c.h.b16 %v84
    %v316 = vunpack.c.l.b16 %v85
    %v317 = vunpack.c.h.b16 %v85
    %v318 = vunpack.c.l.b16 %v86
    %v319 = vunpack.c.h.b16 %v86
    %v320 = vunpack.c.l.b16 %v87
    %v321 = vunpack.c.h.b16 %v87
    %v322 = vunpack.c.l.b16 %v88
    %v323 = vunpack.c.h.b16 %v88
    %v324 = vunpack.c.l.b16 %v89
    %v325 = vunpack.c.h.b16 %v89
    %v326 = vunpack.c.l.b16 %v90
    %v327 = vunpack.c.h.b16 %v90
    %v328 = vunpack.c.l.b16 %v91
    %v329 = vunpack.c.h.b16 %v91
    %v330 = vunpack.c.l.b16 %v92
    %v331 = vunpack.c.h.b16 %v92
    %v332 = vunpack.c.l.b16 %v93
    %v333 = vunpack.c.h.b16 %v93
    %v334 = vunpack.c.l.b16 %v94
    %v335 = vunpack.c.h.b16 %v94
    %v336 = vunpack.c.l.b16 %v95
    %v337 = vunpack.c.h.b16 %v95
    %v338 = vunpack.c.l.b16 %v96
    %v339 = vunpack.c.h.b16 %v96
    %v340 = vunpack.c.l.b16 %v97
    %v341 = vunpack.c.h.b16 %v97
    %v342 = vunpack.c.l.b16 %v98
    %v343 = vunpack.c.h.b16 %v98
    %v344 = vunpack.c.l.b16 %v99
    %v345 = vunpack.c.h.b16 %v99
    %v346 = vunpack.c.l.b16 %v100
    %v347 = vunpack.c.h.b16 %v100
    %v348 = vunpack.c.l.b16 %v101
    %v349 = vunpack.c.h.b16 %v101
    %v350 = vunpack.c.l.b16 %v102
    %v351 = vunpack.c.h.b16 %v102
    %v352 = vunpack.c.l.b16 %v103
    %v353 = vunpack.c.h.b16 %v103
    %v354 = vunpack.c.l.b16 %v104
    %v355 = vunpack.c.h.b16 %v104
    %v356 = vunpack.c.l.b16 %v105
    %v357 = vunpack.c.h.b16 %v105
    %v358 = vunpack.c.l.b16 %v106
    %v359 = vunpack.c.h.b16 %v106
    %v360 = vunpack.c.l.b16 %v107
    %v361 = vunpack.c.h.b16 %v107
    %v362 = vunpack.c.l.b16 %v108
    %v363 = vunpack.c.h.b16 %v108
    %v364 = vunpack.c.l.b16 %v109
    %v365 = vunpack.c.h.b16 %v109
    %v366 = vunpack.c.l.b16 %v110
    %v367 = vunpack.c.h.b16 %v110
    %v368 = vunpack.c.l.b16 %v111
    %v369 = vunpack.c.h.b16 %v111
    %v370 = vunpack.c.l.b16 %v112
    %v371 = vunpack.c.h.b16 %v112
    %v372 = vunpack.c.l.b16 %v113
    %v373 = vunpack.c.h.b16 %v113
    %v374 = vunpack.c.l.b16 %v114
    %v375 = vunpack.c.h.b16 %v114
    %v376 = vunpack.c.l.b16 %v115
    %v377 = vunpack.c.h.b16 %v115
    %v378 = vunpack.c.l.b16 %v116
    %v379 = vunpack.c.h.b16 %v116
    %v380 = vunpack.c.l.b16 %v117
    %v381 = vunpack.c.h.b16 %v117
    %v382 = vunpack.c.l.b16 %v118
    %v383 = vunpack.c.h.b16 %v118
    %v384 = vunpack.c.l.b16 %v119
    %v385 = vunpack.c.h.b16 %v119
    %v386 = vunpack.c.l.b16 %v120
    %v387 = vunpack.c.h.b16 %v120
    %v388 = vunpack.c.l.b16 %v121
    %v389 = vunpack.c.h.b16 %v121
    %v390 = vunpack.c.l.b16 %v122
    %v391 = vunpack.c.h.b16 %v122
    %v392 = vunpack.c.l.b16 %v123
    %v393 = vunpack.c.h.b16 %v123
    %v394 = vunpack.c.l.b16 %v124
    %v395 = vunpack.c.h.b16 %v124
    %v396 = vunpack.c.l.b16 %v125
    %v397 = vunpack.c.h.b16 %v125
    %v398 = vunpack.c.l.b16 %v126
    %v399 = vunpack.c.h.b16 %v126
    %v400 = vunpack.c.l.b16 %v127
    %v401 = vunpack.c.h.b16 %v127
    %v402 = vunpack.c.l.b16 %v128
    %v403 = vunpack.c.h.b16 %v128
    %v404 = vunpack.c.l.b16 %v129
    %v405 = vunpack.c.h.b16 %v129
    %v406 = vunpack.c.l.b16 %v130
    %v407 = vunpack.c.h.b16 %v130
    %v408 = vunpack.c.l.b16 %v131
    %v409 = vunpack.c.h.b16 %v131
    %v410 = vunpack.c.l.b16 %v132
    %v411 = vunpack.c.h.b16 %v132
    %v412 = vunpack.c.l.b16 %v133
    %v413 = vunpack.c.h.b16 %v133
    %v414 = vunpack.c.l.b16 %v134
    %v415 = vunpack.c.h.b16 %v134
    %v416 = vunpack.c.l.b16 %v135
    %v417 = vunpack.c.h.b16 %v135
    %v418 = vunpack.c.l.b16 %v136
    %v419 = vunpack.c.h.b16 %v136
    %v420 = vunpack.c.l.b16 %v137
    %v421 = vunpack.c.h.b16 %v137
    %v422 = vunpack.c.l.b16 %v138
    %v423 = vunpack.c.h.b16 %v138
    %v424 = vunpack.c.l.b16 %v139
    %v425 = vunpack.c.h.b16 %v139
    %v426 = vunpack.c.l.b16 %v140
    %v427 = vunpack.c.h.b16 %v140
    %v428 = vunpack.c.l.b16 %v141
    %v429 = vunpack.c.h.b16 %v141
    %v430 = vunpack.c.l.b16 %v142
    %v431 = vunpack.c.h.b16 %v142
    %v432 = vunpack.c.l.b16 %v143
    %v433 = vunpack.c.h.b16 %v143
    %v434 = vunpack.c.l.b16 %v144
    %v435 = vunpack.c.h.b16 %v144
    %v436 = vunpack.c.l.b16 %v145
    %v437 = vunpack.c.h.b16 %v145
    %v438 = vunpack.c.l.b16 %v146
    %v439 = vunpack.c.h.b16 %v146
    %v440 = vunpack.c.l.b16 %v147
    %v441 = vunpack.c.h.b16 %v147
    %v442 = vunpack.c.l.b16 %v148
    %v443 = vunpack.c.h.b16 %v148
    %v444 = vunpack.c.l.b16 %v149
    %v445 = vunpack.c.h.b16 %v149
    %v446 = vunpack.c.l.b16 %v150
    %v447 = vunpack.c.h.b16 %v150
    %v448 = vunpack.c.l.b16 %v151
    %v449 = vunpack.c.h.b16 %v151
    %v450 = vunpack.c.l.b16 %v152
    %v451 = vunpack.c.h.b16 %v152
    %v452 = vunpack.c.l.b16 %v153
    %v453 = vunpack.c.h.b16 %v153
    %v454 = vunpack.c.l.b16 %v154
    %v455 = vunpack.c.h.b16 %v154
    %v456 = vunpack.c.l.b16 %v155
    %v457 = vunpack.c.h.b16 %v155
    %v458 = vunpack.c.l.b16 %v156
    %v459 = vunpack.c.h.b16 %v156
    %v460 = vunpack.c.l.b16 %v157
    %v461 = vunpack.c.h.b16 %v157
    %v462 = vunpack.c.l.b16 %v158
    %v463 = vunpack.c.h.b16 %v158
    %v464 = vunpack.c.l.b16 %v159
    %v465 = vunpack.c.h.b16 %v159
    %v466 = vpack.c.b16 %v272, %v270
    %v467 = vpack.c.b16 %v273, %v271
    %v468 = vpack.c.b16 %v276, %v274
    %v469 = vpack.c.b16 %v277, %v275
    %v470 = vpack.c.b16 %v280, %v278
    %v471 = vpack.c.b16 %v281, %v279
    %v472 = vpack.c.b16 %v284, %v282
    %v473 = vpack.c.b16 %v285, %v283
    %v474 = vpack.c.b16 %v288, %v286
    %v475 = vpack.c.b16 %v289, %v287
    %v476 = vpack.c.b16 %v292, %v290
    %v477 = vpack.c.b16 %v293, %v291
    %v478 = vpack.c.b16 %v296, %v294
    %v479 = vpack.c.b16 %v297, %v295
    %v480 = vpack.c.b16 %v300, %v298
    %v481 = vpack.c.b16 %v301, %v299
    %v482 = vpack.c.b16 %v304, %v302
    %v483 = vpack.c.b16 %v305, %v303
    %v484 = vpack.c.b16 %v308, %v306
    %v485 = vpack.c.b16 %v309, %v307
    %v486 = vpack.c.b16 %v312, %v310
    %v487 = vpack.c.b16 %v313, %v311
    %v488 = vpack.c.b16 %v316, %v314
    %v489 = vpack.c.b16 %v317, %v315
    %v490 = vpack.c.b16 %v320, %v318
    %v491 = vpack.c.b16 %v321, %v319
    %v492 = vpack.c.b16 %v324, %v322
    %v493 = vpack.c.b16 %v325, %v323
    %v494 = vpack.c.b16 %v328, %v326
    %v495 = vpack.c.b16 %v329, %v327
    %v496 = vpack.c.b16 %v332, %v330
    %v497 = vpack.c.b16 %v333, %v331
    %v498 = vpack.c.b16 %v336, %v334
    %v499 = vpack.c.b16 %v337, %v335
    %v500 = vpack.c.b16 %v340, %v338
    %v501 = vpack.c.b16 %v341, %v339
    %v502 = vpack.c.b16 %v344, %v342
    %v503 = vpack.c.b16 %v345, %v343
    %v504 = vpack.c.b16 %v348, %v346
    %v505 = vpack.c.b16 %v349, %v347
    %v506 = vpack.c.b16 %v352, %v350
    %v507 = vpack.c.b16 %v353, %v351
    %v508 = vpack.c.b16 %v356, %v354
    %v509 = vpack.c.b16 %v357, %v355
    %v510 = vpack.c.b16 %v360, %v358
    %v511 = vpack.c.b16 %v361, %v359
    %v512 = vpack.c.b16 %v364, %v362
    %v513 = vpack.c.b16 %v365, %v363
    %v514 = vpack.c.b16 %v368, %v366
    %v515 = vpack.c.b16 %v369, %v367
    %v516 = vpack.c.b16 %v372, %v370
    %v517 = vpack.c.b16 %v373, %v371
    %v518 = vpack.c.b16 %v376, %v374
    %v519 = vpack.c.b16 %v377, %v375
    %v520 = vpack.c.b16 %v380, %v378
    %v521 = vpack.c.b16 %v381, %v379
    %v522 = vpack.c.b16 %v384, %v382
    %v523 = vpack.c.b16 %v385, %v383
    %v524 = vpack.c.b16 %v388, %v386
    %v525 = vpack.c.b16 %v389, %v387
    %v526 = vpack.c.b16 %v392, %v390
    %v527 = vpack.c.b16 %v393, %v391
    %v528 = vpack.c.b16 %v396, %v394
    %v529 = vpack.c.b16 %v397, %v395
    %v530 = vpack.c.b16 %v400, %v398
    %v531 = vpack.c.b16 %v401, %v399
    %v532 = vpack.c.b16 %v404, %v402
    %v533 = vpack.c.b16 %v405, %v403
    %v534 = vpack.c.b16 %v408, %v406
    %v535 = vpack.c.b16 %v409, %v407
    %v536 = vpack.c.b16 %v412, %v410
    %v537 = vpack.c.b16 %v413, %v411
    %v538 = vpack.c.b16 %v416, %v414
    %v539 = vpack.c.b16 %v417, %v415
    %v540 = vpack.c.b16 %v420, %v418
    %v541 = vpack.c.b16 %v421, %v419
    %v542 = vpack.c.b16 %v424, %v422
    %v543 = vpack.c.b16 %v425, %v423
    %v544 = vpack.c.b16 %v428, %v426
    %v545 = vpack.c.b16 %v429, %v427
    %v546 = vpack.c.b16 %v432, %v430
    %v547 = vpack.c.b16 %v433, %v431
    %v548 = vpack.c.b16 %v436, %v434
    %v549 = vpack.c.b16 %v437, %v435
    %v550 = vpack.c.b16 %v440, %v438
    %v551 = vpack.c.b16 %v441, %v439
    %v552 = vpack.c.b16 %v444, %v442
    %v553 = vpack.c.b16 %v445, %v443
    %v554 = vpack.c.b16 %v448, %v446
    %v555 = vpack.c.b16 %v449, %v447
    %v556 = vpack.c.b16 %v452, %v450
    %v557 = vpack.c.b16 %v453, %v451
    %v558 = vpack.c.b16 %v456, %v454
    %v559 = vpack.c.b16 %v457, %v455
    %v560 = vpack.c.b16 %v460, %v458
    %v561 = vpack.c.b16 %v461, %v459
    %v562 = vpack.c.b16 %v464, %v462
    %v563 = vpack.c.b16 %v465, %v463
    %vm662 = vcmask 130048
    %v664 = vsel %vm662, %v61, 0
    %666 = vmatprep.subr.bf16.mxu0 %v481
    %667 = vmatpush1.bf16.msra.mxu0 %v480
    %668 = vmatprep.subr.bf16.mxu0 %v479
    %669 = vmatpush1.bf16.msra.mxu0 %v478
    %670 = vmatprep.subr.bf16.mxu0 %v477
    %671 = vmatpush1.bf16.msra.mxu0 %v476
    %672 = vmatprep.subr.bf16.mxu0 %v475
    %673 = vmatpush1.bf16.msra.mxu0 %v474
    %674 = vmatprep.subr.bf16.mxu0 %v473
    %675 = vmatpush1.bf16.msra.mxu0 %v472
    %676 = vmatprep.subr.bf16.mxu0 %v471
    %677 = vmatpush1.bf16.msra.mxu0 %v470
    %678 = vmatprep.subr.bf16.mxu0 %v469
    %679 = vmatpush1.bf16.msra.mxu0 %v468
    %680 = vmatprep.subr.bf16.mxu0 %v467
    %681 = vmatpush1.bf16.msra.mxu0 %v466
    %682 = vmatprep.subr.bf16.mxu0 %v497
    %683 = vmatpush2.bf16.msra.mxu0 %v496
    %684 = vmatprep.subr.bf16.mxu0 %v495
    %685 = vmatpush2.bf16.msra.mxu0 %v494
    %686 = vmatprep.subr.bf16.mxu0 %v493
    %687 = vmatpush2.bf16.msra.mxu0 %v492
    %688 = vmatprep.subr.bf16.mxu0 %v491
    %689 = vmatpush2.bf16.msra.mxu0 %v490
    %690 = vmatprep.subr.bf16.mxu0 %v489
    %691 = vmatpush2.bf16.msra.mxu0 %v488
    %692 = vmatprep.subr.bf16.mxu0 %v487
    %693 = vmatpush2.bf16.msra.mxu0 %v486
    %694 = vmatprep.subr.bf16.mxu0 %v485
    %695 = vmatpush2.bf16.msra.mxu0 %v484
    %696 = vmatprep.subr.bf16.mxu0 %v483
    %697 = vmatpush2.bf16.msra.mxu0 %v482
    %698 = vmatprep.mubr.bf16.mxu0 %v56
    %699 = vmatmul.mubr.bf16.gmra.mxu0 %v55
    %v700 = vpop.f32.mrf.mxu0
    %v701 = vadd.f32 %v165, %v700
    %v702 = vpop.f32.mrf.mxu0
    %v703 = vadd.f32 %v169, %v702
    %v704 = vpop.f32.mrf.mxu0
    %v705 = vpop.f32.mrf.mxu0
    %706 = vdwg.mxu0
    %707 = vmatprep.subr.bf16.mxu0 %v513
    %708 = vmatpush1.bf16.msra.mxu0 %v512
    %709 = vmatprep.subr.bf16.mxu0 %v511
    %710 = vmatpush1.bf16.msra.mxu0 %v510
    %711 = vmatprep.subr.bf16.mxu0 %v509
    %712 = vmatpush1.bf16.msra.mxu0 %v508
    %713 = vmatprep.subr.bf16.mxu0 %v507
    %714 = vmatpush1.bf16.msra.mxu0 %v506
    %715 = vmatprep.subr.bf16.mxu0 %v505
    %716 = vmatpush1.bf16.msra.mxu0 %v504
    %717 = vmatprep.subr.bf16.mxu0 %v503
    %718 = vmatpush1.bf16.msra.mxu0 %v502
    %719 = vmatprep.subr.bf16.mxu0 %v501
    %720 = vmatpush1.bf16.msra.mxu0 %v500
    %721 = vmatprep.subr.bf16.mxu0 %v499
    %722 = vmatpush1.bf16.msra.mxu0 %v498
    %723 = vmatprep.subr.bf16.mxu0 %v529
    %724 = vmatpush2.bf16.msra.mxu0 %v528
    %725 = vmatprep.subr.bf16.mxu0 %v527
    %726 = vmatpush2.bf16.msra.mxu0 %v526
    %727 = vmatprep.subr.bf16.mxu0 %v525
    %728 = vmatpush2.bf16.msra.mxu0 %v524
    %729 = vmatprep.subr.bf16.mxu0 %v523
    %730 = vmatpush2.bf16.msra.mxu0 %v522
    %731 = vmatprep.subr.bf16.mxu0 %v521
    %732 = vmatpush2.bf16.msra.mxu0 %v520
    %733 = vmatprep.subr.bf16.mxu0 %v519
    %734 = vmatpush2.bf16.msra.mxu0 %v518
    %735 = vmatprep.subr.bf16.mxu0 %v517
    %736 = vmatpush2.bf16.msra.mxu0 %v516
    %737 = vmatprep.subr.bf16.mxu0 %v515
    %738 = vmatpush2.bf16.msra.mxu0 %v514
    %739 = vmatprep.mubr.bf16.mxu0 %v58
    %740 = vmatmul.mubr.bf16.gmra.mxu0 %v57
    %v741 = vpop.f32.mrf.mxu0
    %v742 = vadd.f32 %v701, %v741
    %v743 = vpop.f32.mrf.mxu0
    %v744 = vadd.f32 %v703, %v743
    %v745 = vpop.f32.mrf.mxu0
    %v746 = vpop.f32.mrf.mxu0
    %747 = vdwg.mxu0
    %748 = vmatprep.subr.bf16.mxu0 %v545
    %749 = vmatpush1.bf16.msra.mxu0 %v544
    %750 = vmatprep.subr.bf16.mxu0 %v543
    %751 = vmatpush1.bf16.msra.mxu0 %v542
    %752 = vmatprep.subr.bf16.mxu0 %v541
    %753 = vmatpush1.bf16.msra.mxu0 %v540
    %754 = vmatprep.subr.bf16.mxu0 %v539
    %755 = vmatpush1.bf16.msra.mxu0 %v538
    %756 = vmatprep.subr.bf16.mxu0 %v537
    %757 = vmatpush1.bf16.msra.mxu0 %v536
    %758 = vmatprep.subr.bf16.mxu0 %v535
    %759 = vmatpush1.bf16.msra.mxu0 %v534
    %760 = vmatprep.subr.bf16.mxu0 %v533
    %761 = vmatpush1.bf16.msra.mxu0 %v532
    %762 = vmatprep.subr.bf16.mxu0 %v531
    %763 = vmatpush1.bf16.msra.mxu0 %v530
    %764 = vmatprep.subr.bf16.mxu0 %v561
    %765 = vmatpush2.bf16.msra.mxu0 %v560
    %766 = vmatprep.subr.bf16.mxu0 %v559
    %767 = vmatpush2.bf16.msra.mxu0 %v558
    %768 = vmatprep.subr.bf16.mxu0 %v557
    %769 = vmatpush2.bf16.msra.mxu0 %v556
    %770 = vmatprep.subr.bf16.mxu0 %v555
    %771 = vmatpush2.bf16.msra.mxu0 %v554
    %772 = vmatprep.subr.bf16.mxu0 %v553
    %773 = vmatpush2.bf16.msra.mxu0 %v552
    %774 = vmatprep.subr.bf16.mxu0 %v551
    %775 = vmatpush2.bf16.msra.mxu0 %v550
    %776 = vmatprep.subr.bf16.mxu0 %v549
    %777 = vmatpush2.bf16.msra.mxu0 %v548
    %778 = vmatprep.subr.bf16.mxu0 %v547
    %779 = vmatpush2.bf16.msra.mxu0 %v546
    %780 = vmatprep.mubr.bf16.mxu0 %v60
    %781 = vmatmul.mubr.bf16.gmra.mxu0 %v59
    %v782 = vpop.f32.mrf.mxu0
    %v783 = vadd.f32 %v742, %v782
    %v784 = vpop.f32.mrf.mxu0
    %v785 = vadd.f32 %v744, %v784
    %v786 = vpop.f32.mrf.mxu0
    %v787 = vpop.f32.mrf.mxu0
    %788 = vdwg.mxu0
    %789 = vmatprep.subr.bf16.mxu0 0
    %790 = vmatpush1.bf16.msra.mxu0 0
    %791 = vmatprep.subr.bf16.mxu0 0
    %792 = vmatpush1.bf16.msra.mxu0 0
    %793 = vmatprep.subr.bf16.mxu0 0
    %794 = vmatpush1.bf16.msra.mxu0 0
    %795 = vmatprep.subr.bf16.mxu0 0
    %796 = vmatpush1.bf16.msra.mxu0 0
    %797 = vmatprep.subr.bf16.mxu0 0
    %798 = vmatpush1.bf16.msra.mxu0 0
    %799 = vmatprep.subr.bf16.mxu0 0
    %800 = vmatpush1.bf16.msra.mxu0 0
    %801 = vmatprep.subr.bf16.mxu0 0
    %802 = vmatpush1.bf16.msra.mxu0 0
    %803 = vmatprep.subr.bf16.mxu0 %v563
    %804 = vmatpush1.bf16.msra.mxu0 %v562
    %805 = vmatprep.subr.bf16.mxu0 0
    %806 = vmatpush2.bf16.msra.mxu0 0
    %807 = vmatprep.subr.bf16.mxu0 0
    %808 = vmatpush2.bf16.msra.mxu0 0
    %809 = vmatprep.subr.bf16.mxu0 0
    %810 = vmatpush2.bf16.msra.mxu0 0
    %811 = vmatprep.subr.bf16.mxu0 0
    %812 = vmatpush2.bf16.msra.mxu0 0
    %813 = vmatprep.subr.bf16.mxu0 0
    %814 = vmatpush2.bf16.msra.mxu0 0
    %815 = vmatprep.subr.bf16.mxu0 0
    %816 = vmatpush2.bf16.msra.mxu0 0
    %817 = vmatprep.subr.bf16.mxu0 0
    %818 = vmatpush2.bf16.msra.mxu0 0
    %819 = vmatprep.subr.bf16.mxu0 0
    %820 = vmatpush2.bf16.msra.mxu0 0
    %821 = vmatprep.mubr.bf16.mxu0 0
    %822 = vmatmul.mubr.bf16.gmra.mxu0 %v664
    %v823 = vpop.f32.mrf.mxu0
    %v824 = vadd.f32 %v783, %v823
    %v825 = vpop.f32.mrf.mxu0
    %v826 = vadd.f32 %v785, %v825
    %v827 = vpop.f32.mrf.mxu0
    %v828 = vpop.f32.mrf.mxu0
    %829 = vdwg.mxu0
    %v830 = vmax.f32 %v824, 0.0
    %v831 = vmax.f32 %v826, 0.0
    %v832 = vpack.c.bf16 %v830, %v830
    %v833 = vpack.c.bf16 %v831, %v831
    %v834 = vld [vmem:[%s3] sm:$0xf]
    %v835 = vld [vmem:[%s3 + $0x4] sm:$0xf]
    %v836 = vld [vmem:[%s3 + $0x8] sm:$0xf]
    %v837 = vld [vmem:[%s3 + $0xc] sm:$0xf]
    %v838 = vld [vmem:[%s3 + $0x10] sm:$0xf]
    %v839 = vld [vmem:[%s3 + $0x14] sm:$0xf]
    %v840 = vld [vmem:[%s3 + $0x18] sm:$0xf]
    %v841 = vld [vmem:[%s3 + $0x1c] sm:$0xf]
    %v842 = vld [vmem:[%s3 + $0x20] sm:$0xf]
    %v843 = vld [vmem:[%s3 + $0x24] sm:$0xf]
    %v844 = vld [vmem:[%s3 + $0x28] sm:$0xf]
    %v845 = vld [vmem:[%s3 + $0x2c] sm:$0xf]
    %v846 = vld [vmem:[%s3 + $0x30] sm:$0xf]
    %v847 = vld [vmem:[%s3 + $0x34] sm:$0xf]
    %v848 = vld [vmem:[%s3 + $0x38] sm:$0xf]
    %v849 = vld [vmem:[%s3 + $0x3c] sm:$0xf]
    %v850 = vld [vmem:[%s3 + $0x40] sm:$0xf]
    %v851 = vld [vmem:[%s3 + $0x44] sm:$0xf]
    %v852 = vld [vmem:[%s3 + $0x48] sm:$0xf]
    %v853 = vld [vmem:[%s3 + $0x4c] sm:$0xf]
    %v854 = vld [vmem:[%s3 + $0x50] sm:$0xf]
    %v855 = vld [vmem:[%s3 + $0x54] sm:$0xf]
    %v856 = vld [vmem:[%s3 + $0x58] sm:$0xf]
    %v857 = vld [vmem:[%s3 + $0x5c] sm:$0xf]
    %v858 = vld [vmem:[%s3 + $0x60] sm:$0xf]
    %v859 = vld [vmem:[%s3 + $0x64] sm:$0xf]
    %v860 = vld [vmem:[%s3 + $0x68] sm:$0xf]
    %v861 = vld [vmem:[%s3 + $0x6c] sm:$0xf]
    %v862 = vld [vmem:[%s3 + $0x70] sm:$0xf]
    %v863 = vld [vmem:[%s3 + $0x74] sm:$0xf]
    %v864 = vld [vmem:[%s3 + $0x78] sm:$0xf]
    %v865 = vld [vmem:[%s3 + $0x7c] sm:$0xf]
    %v866 = vld [vmem:[%s4] sm:$0x1]
    %v868 = vlaneseq
    %v869 = vshrl.u32 %v868, 7
    %v870 = vsub.s32 0, %v869
    %v871 = vrot.slane %v866, %v870
    %v905 = vunpack.c.l.b16 %v834
    %v906 = vunpack.c.l.b16 %v835
    %v907 = vunpack.c.l.b16 %v836
    %v908 = vunpack.c.l.b16 %v837
    %v909 = vunpack.c.l.b16 %v838
    %v910 = vunpack.c.l.b16 %v839
    %v911 = vunpack.c.l.b16 %v840
    %v912 = vunpack.c.l.b16 %v841
    %v913 = vunpack.c.l.b16 %v842
    %v914 = vunpack.c.l.b16 %v843
    %v915 = vunpack.c.l.b16 %v844
    %v916 = vunpack.c.l.b16 %v845
    %v917 = vunpack.c.l.b16 %v846
    %v918 = vunpack.c.l.b16 %v847
    %v919 = vunpack.c.l.b16 %v848
    %v920 = vunpack.c.l.b16 %v849
    %v921 = vunpack.c.l.b16 %v850
    %v922 = vunpack.c.l.b16 %v851
    %v923 = vunpack.c.l.b16 %v852
    %v924 = vunpack.c.l.b16 %v853
    %v925 = vunpack.c.l.b16 %v854
    %v926 = vunpack.c.l.b16 %v855
    %v927 = vunpack.c.l.b16 %v856
    %v928 = vunpack.c.l.b16 %v857
    %v929 = vunpack.c.l.b16 %v858
    %v930 = vunpack.c.l.b16 %v859
    %v931 = vunpack.c.l.b16 %v860
    %v932 = vunpack.c.l.b16 %v861
    %v933 = vunpack.c.l.b16 %v862
    %v934 = vunpack.c.l.b16 %v863
    %v935 = vunpack.c.l.b16 %v864
    %v936 = vunpack.c.l.b16 %v865
    %v937 = vpack.c.b16 %v906, %v905
    %v938 = vpack.c.b16 %v908, %v907
    %v939 = vpack.c.b16 %v910, %v909
    %v940 = vpack.c.b16 %v912, %v911
    %v941 = vpack.c.b16 %v914, %v913
    %v942 = vpack.c.b16 %v916, %v915
    %v943 = vpack.c.b16 %v918, %v917
    %v944 = vpack.c.b16 %v920, %v919
    %v945 = vpack.c.b16 %v922, %v921
    %v946 = vpack.c.b16 %v924, %v923
    %v947 = vpack.c.b16 %v926, %v925
    %v948 = vpack.c.b16 %v928, %v927
    %v949 = vpack.c.b16 %v930, %v929
    %v950 = vpack.c.b16 %v932, %v931
    %v951 = vpack.c.b16 %v934, %v933
    %v952 = vpack.c.b16 %v936, %v935
    %969 = vmatprep.subr.bf16.mxu0 0
    %970 = vmatpush1.bf16.msra.mxu0 %v944
    %971 = vmatprep.subr.bf16.mxu0 0
    %972 = vmatpush1.bf16.msra.mxu0 %v943
    %973 = vmatprep.subr.bf16.mxu0 0
    %974 = vmatpush1.bf16.msra.mxu0 %v942
    %975 = vmatprep.subr.bf16.mxu0 0
    %976 = vmatpush1.bf16.msra.mxu0 %v941
    %977 = vmatprep.subr.bf16.mxu0 0
    %978 = vmatpush1.bf16.msra.mxu0 %v940
    %979 = vmatprep.subr.bf16.mxu0 0
    %980 = vmatpush1.bf16.msra.mxu0 %v939
    %981 = vmatprep.subr.bf16.mxu0 0
    %982 = vmatpush1.bf16.msra.mxu0 %v938
    %983 = vmatprep.subr.bf16.mxu0 0
    %984 = vmatpush1.bf16.msra.mxu0 %v937
    %985 = vmatprep.subr.bf16.mxu0 0
    %986 = vmatpush2.bf16.msra.mxu0 %v952
    %987 = vmatprep.subr.bf16.mxu0 0
    %988 = vmatpush2.bf16.msra.mxu0 %v951
    %989 = vmatprep.subr.bf16.mxu0 0
    %990 = vmatpush2.bf16.msra.mxu0 %v950
    %991 = vmatprep.subr.bf16.mxu0 0
    %992 = vmatpush2.bf16.msra.mxu0 %v949
    %993 = vmatprep.subr.bf16.mxu0 0
    %994 = vmatpush2.bf16.msra.mxu0 %v948
    %995 = vmatprep.subr.bf16.mxu0 0
    %996 = vmatpush2.bf16.msra.mxu0 %v947
    %997 = vmatprep.subr.bf16.mxu0 0
    %998 = vmatpush2.bf16.msra.mxu0 %v946
    %999 = vmatprep.subr.bf16.mxu0 0
    %1000 = vmatpush2.bf16.msra.mxu0 %v945
    %1001 = vmatprep.mubr.bf16.mxu0 %v833
    %1002 = vmatmul.mubr.bf16.gmra.mxu0 %v832
    %v1003 = vpop.f32.mrf.mxu0
    %v1004 = vadd.f32 %v871, %v1003
    %v1005 = vpop.f32.mrf.mxu0
    %v1006 = vpop.f32.mrf.mxu0
    %v1007 = vpop.f32.mrf.mxu0
    %1008 = vdwg.mxu0
    %v1009 = vmax.f32 %v1004, 0.0
    %v1010 = vpack.c.bf16 %v1009, %v1009
    %v1011 = vld [vmem:[%s5] sm:$0xf]
    %v1012 = vld [vmem:[%s5 + $0x4] sm:$0xf]
    %v1013 = vld [vmem:[%s5 + $0x8] sm:$0xf]
    %v1014 = vld [vmem:[%s5 + $0xc] sm:$0xf]
    %v1015 = vld [vmem:[%s6] sm:$0x1]
    %v1017 = vlaneseq
    %v1018 = vshrl.u32 %v1017, 7
    %v1019 = vsub.s32 0, %v1018
    %v1020 = vrot.slane %v1015, %v1019
    %v1026 = vunpack.c.l.b16 %v1011
    %v1027 = vunpack.c.l.b16 %v1012
    %v1028 = vunpack.c.l.b16 %v1013
    %v1029 = vunpack.c.l.b16 %v1014
    %v1030 = vpack.c.b16 %v1027, %v1026
    %v1031 = vpack.c.b16 %v1029, %v1028
    %vm1034 = vcmask 261120
    %v1036 = vsel %vm1034, %v1010, 0
    %1038 = vmatprep.subr.bf16.mxu0 0
    %1039 = vmatpush1.bf16.msra.mxu0 0
    %1040 = vmatprep.subr.bf16.mxu0 0
    %1041 = vmatpush1.bf16.msra.mxu0 0
    %1042 = vmatprep.subr.bf16.mxu0 0
    %1043 = vmatpush1.bf16.msra.mxu0 0
    %1044 = vmatprep.subr.bf16.mxu0 0
    %1045 = vmatpush1.bf16.msra.mxu0 0
    %1046 = vmatprep.subr.bf16.mxu0 0
    %1047 = vmatpush1.bf16.msra.mxu0 0
    %1048 = vmatprep.subr.bf16.mxu0 0
    %1049 = vmatpush1.bf16.msra.mxu0 0
    %1050 = vmatprep.subr.bf16.mxu0 0
    %1051 = vmatpush1.bf16.msra.mxu0 %v1031
    %1052 = vmatprep.subr.bf16.mxu0 0
    %1053 = vmatpush1.bf16.msra.mxu0 %v1030
    %1054 = vmatprep.subr.bf16.mxu0 0
    %1055 = vmatpush2.bf16.msra.mxu0 0
    %1056 = vmatprep.subr.bf16.mxu0 0
    %1057 = vmatpush2.bf16.msra.mxu0 0
    %1058 = vmatprep.subr.bf16.mxu0 0
    %1059 = vmatpush2.bf16.msra.mxu0 0
    %1060 = vmatprep.subr.bf16.mxu0 0
    %1061 = vmatpush2.bf16.msra.mxu0 0
    %1062 = vmatprep.subr.bf16.mxu0 0
    %1063 = vmatpush2.bf16.msra.mxu0 0
    %1064 = vmatprep.subr.bf16.mxu0 0
    %1065 = vmatpush2.bf16.msra.mxu0 0
    %1066 = vmatprep.subr.bf16.mxu0 0
    %1067 = vmatpush2.bf16.msra.mxu0 0
    %1068 = vmatprep.subr.bf16.mxu0 0
    %1069 = vmatpush2.bf16.msra.mxu0 0
    %1070 = vmatprep.mubr.bf16.mxu0 0
    %1071 = vmatmul.mubr.bf16.gmra.mxu0 %v1036
    %v1072 = vpop.f32.mrf.mxu0
    %v1073 = vadd.f32 %v1020, %v1072
    %v1074 = vpop.f32.mrf.mxu0
    %v1075 = vpop.f32.mrf.mxu0
    %v1076 = vpop.f32.mrf.mxu0
    %1077 = vdwg.mxu0
    %vm1078 = vcmask 15360
    %1079 = vst.msk [vmem:[%s13] sm:$0xff] %vm1078, %v1073
    %v1080 = vld [vmem:[%s7] sm:$0xf]
    %v1081 = vld [vmem:[%s7 + $0x4] sm:$0xf]
    %v1082 = vld [vmem:[%s7 + $0x8] sm:$0xf]
    %v1083 = vld [vmem:[%s7 + $0xc] sm:$0xf]
    %v1084 = vld [vmem:[%s8] sm:$0x1]
    %v1086 = vlaneseq
    %v1087 = vshrl.u32 %v1086, 7
    %v1088 = vsub.s32 0, %v1087
    %v1089 = vrot.slane %v1084, %v1088
    %v1095 = vunpack.c.l.b16 %v1080
    %v1096 = vunpack.c.l.b16 %v1081
    %v1097 = vunpack.c.l.b16 %v1082
    %v1098 = vunpack.c.l.b16 %v1083
    %v1099 = vpack.c.b16 %v1096, %v1095
    %v1100 = vpack.c.b16 %v1098, %v1097
    %1103 = vmatprep.subr.bf16.mxu0 0
    %1104 = vmatpush1.bf16.msra.mxu0 0
    %1105 = vmatprep.subr.bf16.mxu0 0
    %1106 = vmatpush1.bf16.msra.mxu0 0
    %1107 = vmatprep.subr.bf16.mxu0 0
    %1108 = vmatpush1.bf16.msra.mxu0 0
    %1109 = vmatprep.subr.bf16.mxu0 0
    %1110 = vmatpush1.bf16.msra.mxu0 0
    %1111 = vmatprep.subr.bf16.mxu0 0
    %1112 = vmatpush1.bf16.msra.mxu0 0
    %1113 = vmatprep.subr.bf16.mxu0 0
    %1114 = vmatpush1.bf16.msra.mxu0 0
    %1115 = vmatprep.subr.bf16.mxu0 0
    %1116 = vmatpush1.bf16.msra.mxu0 %v1100
    %1117 = vmatprep.subr.bf16.mxu0 0
    %1118 = vmatpush1.bf16.msra.mxu0 %v1099
    %1119 = vmatprep.subr.bf16.mxu0 0
    %1120 = vmatpush2.bf16.msra.mxu0 0
    %1121 = vmatprep.subr.bf16.mxu0 0
    %1122 = vmatpush2.bf16.msra.mxu0 0
    %1123 = vmatprep.subr.bf16.mxu0 0
    %1124 = vmatpush2.bf16.msra.mxu0 0
    %1125 = vmatprep.subr.bf16.mxu0 0
    %1126 = vmatpush2.bf16.msra.mxu0 0
    %1127 = vmatprep.subr.bf16.mxu0 0
    %1128 = vmatpush2.bf16.msra.mxu0 0
    %1129 = vmatprep.subr.bf16.mxu0 0
    %1130 = vmatpush2.bf16.msra.mxu0 0
    %1131 = vmatprep.subr.bf16.mxu0 0
    %1132 = vmatpush2.bf16.msra.mxu0 0
    %1133 = vmatprep.subr.bf16.mxu0 0
    %1134 = vmatpush2.bf16.msra.mxu0 0
    %1135 = vmatprep.mubr.bf16.mxu0 0
    %1136 = vmatmul.mubr.bf16.gmra.mxu0 %v1036
    %v1137 = vpop.f32.mrf.mxu0
    %v1138 = vadd.f32 %v1089, %v1137
    %v1139 = vpop.f32.mrf.mxu0
    %v1140 = vpop.f32.mrf.mxu0
    %v1141 = vpop.f32.mrf.mxu0
    %1142 = vdwg.mxu0
    %v1143 = vmax.f32 %v1138, 0.0
    %v1144 = vpack.c.bf16 %v1143, %v1143
    %v1145 = vld [vmem:[%s9] sm:$0xff]
    %v1146 = vld [vmem:[%s9 + $0x8] sm:$0xff]
    %v1147 = vld [vmem:[%s9 + $0x10] sm:$0xff]
    %v1148 = vld [vmem:[%s9 + $0x18] sm:$0xff]
    %v1149 = vld [vmem:[%s10] sm:$0x3]
    %v1151 = vlaneseq
    %v1152 = vshrl.u32 %v1151, 7
    %v1153 = vsub.s32 0, %v1152
    %v1154 = vrot.slane %v1149, %v1153
    %v1155 = vlaneseq
    %v1156 = vshrl.u32 %v1155, 7
    %v1157 = vsub.s32 1, %v1156
    %v1158 = vrot.slane %v1149, %v1157
    %v1165 = vunpack.c.l.b16 %v1145
    %v1166 = vunpack.c.h.b16 %v1145
    %v1167 = vunpack.c.l.b16 %v1146
    %v1168 = vunpack.c.h.b16 %v1146
    %v1169 = vunpack.c.l.b16 %v1147
    %v1170 = vunpack.c.h.b16 %v1147
    %v1171 = vunpack.c.l.b16 %v1148
    %v1172 = vunpack.c.h.b16 %v1148
    %v1173 = vpack.c.b16 %v1167, %v1165
    %v1174 = vpack.c.b16 %v1168, %v1166
    %v1175 = vpack.c.b16 %v1171, %v1169
    %v1176 = vpack.c.b16 %v1172, %v1170
    %v1182 = vsel %vm1034, %v1144, 0
    %1184 = vmatprep.subr.bf16.mxu0 0
    %1185 = vmatpush1.bf16.msra.mxu0 0
    %1186 = vmatprep.subr.bf16.mxu0 0
    %1187 = vmatpush1.bf16.msra.mxu0 0
    %1188 = vmatprep.subr.bf16.mxu0 0
    %1189 = vmatpush1.bf16.msra.mxu0 0
    %1190 = vmatprep.subr.bf16.mxu0 0
    %1191 = vmatpush1.bf16.msra.mxu0 0
    %1192 = vmatprep.subr.bf16.mxu0 0
    %1193 = vmatpush1.bf16.msra.mxu0 0
    %1194 = vmatprep.subr.bf16.mxu0 0
    %1195 = vmatpush1.bf16.msra.mxu0 0
    %1196 = vmatprep.subr.bf16.mxu0 %v1176
    %1197 = vmatpush1.bf16.msra.mxu0 %v1175
    %1198 = vmatprep.subr.bf16.mxu0 %v1174
    %1199 = vmatpush1.bf16.msra.mxu0 %v1173
    %1200 = vmatprep.subr.bf16.mxu0 0
    %1201 = vmatpush2.bf16.msra.mxu0 0
    %1202 = vmatprep.subr.bf16.mxu0 0
    %1203 = vmatpush2.bf16.msra.mxu0 0
    %1204 = vmatprep.subr.bf16.mxu0 0
    %1205 = vmatpush2.bf16.msra.mxu0 0
    %1206 = vmatprep.subr.bf16.mxu0 0
    %1207 = vmatpush2.bf16.msra.mxu0 0
    %1208 = vmatprep.subr.bf16.mxu0 0
    %1209 = vmatpush2.bf16.msra.mxu0 0
    %1210 = vmatprep.subr.bf16.mxu0 0
    %1211 = vmatpush2.bf16.msra.mxu0 0
    %1212 = vmatprep.subr.bf16.mxu0 0
    %1213 = vmatpush2.bf16.msra.mxu0 0
    %1214 = vmatprep.subr.bf16.mxu0 0
    %1215 = vmatpush2.bf16.msra.mxu0 0
    %1216 = vmatprep.mubr.bf16.mxu0 0
    %1217 = vmatmul.mubr.bf16.gmra.mxu0 %v1182
    %v1218 = vpop.f32.mrf.mxu0
    %v1219 = vadd.f32 %v1154, %v1218
    %v1220 = vpop.f32.mrf.mxu0
    %v1221 = vadd.f32 %v1158, %v1220
    %v1222 = vpop.f32.mrf.mxu0
    %v1223 = vpop.f32.mrf.mxu0
    %1224 = vdwg.mxu0
    %v1225 = vmax.f32 %v1219, 0.0
    %v1226 = vmax.f32 %v1221, 0.0
    %v1227 = vpack.c.bf16 %v1225, %v1225
    %v1228 = vpack.c.bf16 %v1226, %v1226
    %v1229 = vld [vmem:[%s11] sm:$0xff]
    %v1230 = vld [vmem:[%s11 + $0x8] sm:$0xff]
    %v1231 = vld [vmem:[%s11 + $0x10] sm:$0xff]
    %v1232 = vld [vmem:[%s11 + $0x18] sm:$0xf]
    %v1233 = vld [vmem:[%s11 + $0x1c] sm:$0xff]
    %v1234 = vld [vmem:[%s11 + $0x24] sm:$0xff]
    %v1235 = vld [vmem:[%s11 + $0x2c] sm:$0xff]
    %v1236 = vld [vmem:[%s11 + $0x34] sm:$0xf]
    %v1237 = vld [vmem:[%s11 + $0x38] sm:$0xff]
    %v1238 = vld [vmem:[%s11 + $0x40] sm:$0xff]
    %v1239 = vld [vmem:[%s11 + $0x48] sm:$0xff]
    %v1240 = vld [vmem:[%s11 + $0x50] sm:$0xf]
    %v1241 = vld [vmem:[%s11 + $0x54] sm:$0xff]
    %v1242 = vld [vmem:[%s11 + $0x5c] sm:$0xff]
    %v1243 = vld [vmem:[%s11 + $0x64] sm:$0xff]
    %v1244 = vld [vmem:[%s11 + $0x6c] sm:$0xf]
    %v1245 = vld [vmem:[%s11 + $0x70] sm:$0xff]
    %v1246 = vld [vmem:[%s11 + $0x78] sm:$0xff]
    %v1247 = vld [vmem:[%s11 + $0x80] sm:$0xff]
    %v1248 = vld [vmem:[%s11 + $0x88] sm:$0xf]
    %v1249 = vld [vmem:[%s11 + $0x8c] sm:$0xff]
    %v1250 = vld [vmem:[%s11 + $0x94] sm:$0xff]
    %v1251 = vld [vmem:[%s11 + $0x9c] sm:$0xff]
    %v1252 = vld [vmem:[%s11 + $0xa4] sm:$0xf]
    %v1253 = vld [vmem:[%s11 + $0xa8] sm:$0xff]
    %v1254 = vld [vmem:[%s11 + $0xb0] sm:$0xff]
    %v1255 = vld [vmem:[%s11 + $0xb8] sm:$0xff]
    %v1256 = vld [vmem:[%s11 + $0xc0] sm:$0xf]
    %v1257 = vld [vmem:[%s11 + $0xc4] sm:$0xff]
    %v1258 = vld [vmem:[%s11 + $0xcc] sm:$0xff]
    %v1259 = vld [vmem:[%s11 + $0xd4] sm:$0xff]
    %v1260 = vld [vmem:[%s11 + $0xdc] sm:$0xf]
    %v1261 = vld [vmem:[%s11 + $0xe0] sm:$0xff]
    %v1262 = vld [vmem:[%s11 + $0xe8] sm:$0xff]
    %v1263 = vld [vmem:[%s11 + $0xf0] sm:$0xff]
    %v1264 = vld [vmem:[%s11 + $0xf8] sm:$0xf]
    %v1265 = vld [vmem:[%s11 + $0xfc] sm:$0xff]
    %v1266 = vld [vmem:[%s11 + $0x104] sm:$0xff]
    %v1267 = vld [vmem:[%s11 + $0x10c] sm:$0xff]
    %v1268 = vld [vmem:[%s11 + $0x114] sm:$0xf]
    %v1269 = vld [vmem:[%s11 + $0x118] sm:$0xff]
    %v1270 = vld [vmem:[%s11 + $0x120] sm:$0xff]
    %v1271 = vld [vmem:[%s11 + $0x128] sm:$0xff]
    %v1272 = vld [vmem:[%s11 + $0x130] sm:$0xf]
    %v1273 = vld [vmem:[%s11 + $0x134] sm:$0xff]
    %v1274 = vld [vmem:[%s11 + $0x13c] sm:$0xff]
    %v1275 = vld [vmem:[%s11 + $0x144] sm:$0xff]
    %v1276 = vld [vmem:[%s11 + $0x14c] sm:$0xf]
    %v1277 = vld [vmem:[%s11 + $0x150] sm:$0xff]
    %v1278 = vld [vmem:[%s11 + $0x158] sm:$0xff]
    %v1279 = vld [vmem:[%s11 + $0x160] sm:$0xff]
    %v1280 = vld [vmem:[%s11 + $0x168] sm:$0xf]
    %v1281 = vld [vmem:[%s11 + $0x16c] sm:$0xff]
    %v1282 = vld [vmem:[%s11 + $0x174] sm:$0xff]
    %v1283 = vld [vmem:[%s11 + $0x17c] sm:$0xff]
    %v1284 = vld [vmem:[%s11 + $0x184] sm:$0xf]
    %v1285 = vld [vmem:[%s11 + $0x188] sm:$0xff]
    %v1286 = vld [vmem:[%s11 + $0x190] sm:$0xff]
    %v1287 = vld [vmem:[%s11 + $0x198] sm:$0xff]
    %v1288 = vld [vmem:[%s11 + $0x1a0] sm:$0xf]
    %v1289 = vld [vmem:[%s11 + $0x1a4] sm:$0xff]
    %v1290 = vld [vmem:[%s11 + $0x1ac] sm:$0xff]
    %v1291 = vld [vmem:[%s11 + $0x1b4] sm:$0xff]
    %v1292 = vld [vmem:[%s11 + $0x1bc] sm:$0xf]
    %v1293 = vld [vmem:[%s11 + $0x1c0] sm:$0xff]
    %v1294 = vld [vmem:[%s11 + $0x1c8] sm:$0xff]
    %v1295 = vld [vmem:[%s11 + $0x1d0] sm:$0xff]
    %v1296 = vld [vmem:[%s11 + $0x1d8] sm:$0xf]
    %v1297 = vld [vmem:[%s11 + $0x1dc] sm:$0xff]
    %v1298 = vld [vmem:[%s11 + $0x1e4] sm:$0xff]
    %v1299 = vld [vmem:[%s11 + $0x1ec] sm:$0xff]
    %v1300 = vld [vmem:[%s11 + $0x1f4] sm:$0xf]
    %v1301 = vld [vmem:[%s11 + $0x1f8] sm:$0xff]
    %v1302 = vld [vmem:[%s11 + $0x200] sm:$0xff]
    %v1303 = vld [vmem:[%s11 + $0x208] sm:$0xff]
    %v1304 = vld [vmem:[%s11 + $0x210] sm:$0xf]
    %v1305 = vld [vmem:[%s11 + $0x214] sm:$0xff]
    %v1306 = vld [vmem:[%s11 + $0x21c] sm:$0xff]
    %v1307 = vld [vmem:[%s11 + $0x224] sm:$0xff]
    %v1308 = vld [vmem:[%s11 + $0x22c] sm:$0xf]
    %v1309 = vld [vmem:[%s11 + $0x230] sm:$0xff]
    %v1310 = vld [vmem:[%s11 + $0x238] sm:$0xff]
    %v1311 = vld [vmem:[%s11 + $0x240] sm:$0xff]
    %v1312 = vld [vmem:[%s11 + $0x248] sm:$0xf]
    %v1313 = vld [vmem:[%s11 + $0x24c] sm:$0xff]
    %v1314 = vld [vmem:[%s11 + $0x254] sm:$0xff]
    %v1315 = vld [vmem:[%s11 + $0x25c] sm:$0xff]
    %v1316 = vld [vmem:[%s11 + $0x264] sm:$0xf]
    %v1317 = vld [vmem:[%s11 + $0x268] sm:$0xff]
    %v1318 = vld [vmem:[%s11 + $0x270] sm:$0xff]
    %v1319 = vld [vmem:[%s11 + $0x278] sm:$0xff]
    %v1320 = vld [vmem:[%s11 + $0x280] sm:$0xf]
    %v1321 = vld [vmem:[%s11 + $0x284] sm:$0xff]
    %v1322 = vld [vmem:[%s11 + $0x28c] sm:$0xff]
    %v1323 = vld [vmem:[%s11 + $0x294] sm:$0xff]
    %v1324 = vld [vmem:[%s11 + $0x29c] sm:$0xf]
    %v1325 = vld [vmem:[%s11 + $0x2a0] sm:$0xff]
    %v1326 = vld [vmem:[%s11 + $0x2a8] sm:$0xff]
    %v1327 = vld [vmem:[%s11 + $0x2b0] sm:$0xff]
    %v1328 = vld [vmem:[%s11 + $0x2b8] sm:$0xf]
    %v1329 = vld [vmem:[%s11 + $0x2bc] sm:$0xff]
    %v1330 = vld [vmem:[%s11 + $0x2c4] sm:$0xff]
    %v1331 = vld [vmem:[%s11 + $0x2cc] sm:$0xff]
    %v1332 = vld [vmem:[%s11 + $0x2d4] sm:$0xf]
    %v1333 = vld [vmem:[%s11 + $0x2d8] sm:$0xff]
    %v1334 = vld [vmem:[%s11 + $0x2e0] sm:$0xff]
    %v1335 = vld [vmem:[%s11 + $0x2e8] sm:$0xff]
    %v1336 = vld [vmem:[%s11 + $0x2f0] sm:$0xf]
    %v1337 = vld [vmem:[%s11 + $0x2f4] sm:$0xff]
    %v1338 = vld [vmem:[%s11 + $0x2fc] sm:$0xff]
    %v1339 = vld [vmem:[%s11 + $0x304] sm:$0xff]
    %v1340 = vld [vmem:[%s11 + $0x30c] sm:$0xf]
    %v1341 = vld [vmem:[%s11 + $0x310] sm:$0xff]
    %v1342 = vld [vmem:[%s11 + $0x318] sm:$0xff]
    %v1343 = vld [vmem:[%s11 + $0x320] sm:$0xff]
    %v1344 = vld [vmem:[%s11 + $0x328] sm:$0xf]
    %v1345 = vld [vmem:[%s11 + $0x32c] sm:$0xff]
    %v1346 = vld [vmem:[%s11 + $0x334] sm:$0xff]
    %v1347 = vld [vmem:[%s11 + $0x33c] sm:$0xff]
    %v1348 = vld [vmem:[%s11 + $0x344] sm:$0xf]
    %v1349 = vld [vmem:[%s11 + $0x348] sm:$0xff]
    %v1350 = vld [vmem:[%s11 + $0x350] sm:$0xff]
    %v1351 = vld [vmem:[%s11 + $0x358] sm:$0xff]
    %v1352 = vld [vmem:[%s11 + $0x360] sm:$0xf]
    %v1353 = vld [vmem:[%s11 + $0x364] sm:$0xff]
    %v1354 = vld [vmem:[%s11 + $0x36c] sm:$0xff]
    %v1355 = vld [vmem:[%s11 + $0x374] sm:$0xff]
    %v1356 = vld [vmem:[%s11 + $0x37c] sm:$0xf]
    %v1357 = vld [vmem:[%s12] sm:$0x7f]
    %v1359 = vlaneseq
    %v1360 = vshrl.u32 %v1359, 7
    %v1361 = vsub.s32 0, %v1360
    %v1362 = vrot.slane %v1357, %v1361
    %v1363 = vlaneseq
    %v1364 = vshrl.u32 %v1363, 7
    %v1365 = vsub.s32 1, %v1364
    %v1366 = vrot.slane %v1357, %v1365
    %v1367 = vlaneseq
    %v1368 = vshrl.u32 %v1367, 7
    %v1369 = vsub.s32 2, %v1368
    %v1370 = vrot.slane %v1357, %v1369
    %v1371 = vlaneseq
    %v1372 = vshrl.u32 %v1371, 7
    %v1373 = vsub.s32 3, %v1372
    %v1374 = vrot.slane %v1357, %v1373
    %v1375 = vlaneseq
    %v1376 = vshrl.u32 %v1375, 7
    %v1377 = vsub.s32 4, %v1376
    %v1378 = vrot.slane %v1357, %v1377
    %v1379 = vlaneseq
    %v1380 = vshrl.u32 %v1379, 7
    %v1381 = vsub.s32 5, %v1380
    %v1382 = vrot.slane %v1357, %v1381
    %v1383 = vlaneseq
    %v1384 = vshrl.u32 %v1383, 7
    %v1385 = vsub.s32 6, %v1384
    %v1386 = vrot.slane %v1357, %v1385
    %v1522 = vunpack.c.l.b16 %v1229
    %v1523 = vunpack.c.h.b16 %v1229
    %v1524 = vunpack.c.l.b16 %v1230
    %v1525 = vunpack.c.h.b16 %v1230
    %v1526 = vunpack.c.l.b16 %v1231
    %v1527 = vunpack.c.h.b16 %v1231
    %v1528 = vunpack.c.l.b16 %v1232
    %v1529 = vunpack.c.l.b16 %v1233
    %v1530 = vunpack.c.h.b16 %v1233
    %v1531 = vunpack.c.l.b16 %v1234
    %v1532 = vunpack.c.h.b16 %v1234
    %v1533 = vunpack.c.l.b16 %v1235
    %v1534 = vunpack.c.h.b16 %v1235
    %v1535 = vunpack.c.l.b16 %v1236
    %v1536 = vunpack.c.l.b16 %v1237
    %v1537 = vunpack.c.h.b16 %v1237
    %v1538 = vunpack.c.l.b16 %v1238
    %v1539 = vunpack.c.h.b16 %v1238
    %v1540 = vunpack.c.l.b16 %v1239
    %v1541 = vunpack.c.h.b16 %v1239
    %v1542 = vunpack.c.l.b16 %v1240
    %v1543 = vunpack.c.l.b16 %v1241
    %v1544 = vunpack.c.h.b16 %v1241
    %v1545 = vunpack.c.l.b16 %v1242
    %v1546 = vunpack.c.h.b16 %v1242
    %v1547 = vunpack.c.l.b16 %v1243
    %v1548 = vunpack.c.h.b16 %v1243
    %v1549 = vunpack.c.l.b16 %v1244
    %v1550 = vunpack.c.l.b16 %v1245
    %v1551 = vunpack.c.h.b16 %v1245
    %v1552 = vunpack.c.l.b16 %v1246
    %v1553 = vunpack.c.h.b16 %v1246
    %v1554 = vunpack.c.l.b16 %v1247
    %v1555 = vunpack.c.h.b16 %v1247
    %v1556 = vunpack.c.l.b16 %v1248
    %v1557 = vunpack.c.l.b16 %v1249
    %v1558 = vunpack.c.h.b16 %v1249
    %v1559 = vunpack.c.l.b16 %v1250
    %v1560 = vunpack.c.h.b16 %v1250
    %v1561 = vunpack.c.l.b16 %v1251
    %v1562 = vunpack.c.h.b16 %v1251
    %v1563 = vunpack.c.l.b16 %v1252
    %v1564 = vunpack.c.l.b16 %v1253
    %v1565 = vunpack.c.h.b16 %v1253
    %v1566 = vunpack.c.l.b16 %v1254
    %v1567 = vunpack.c.h.b16 %v1254
    %v1568 = vunpack.c.l.b16 %v1255
    %v1569 = vunpack.c.h.b16 %v1255
    %v1570 = vunpack.c.l.b16 %v1256
    %v1571 = vunpack.c.l.b16 %v1257
    %v1572 = vunpack.c.h.b16 %v1257
    %v1573 = vunpack.c.l.b16 %v1258
    %v1574 = vunpack.c.h.b16 %v1258
    %v1575 = vunpack.c.l.b16 %v1259
    %v1576 = vunpack.c.h.b16 %v1259
    %v1577 = vunpack.c.l.b16 %v1260
    %v1578 = vunpack.c.l.b16 %v1261
    %v1579 = vunpack.c.h.b16 %v1261
    %v1580 = vunpack.c.l.b16 %v1262
    %v1581 = vunpack.c.h.b16 %v1262
    %v1582 = vunpack.c.l.b16 %v1263
    %v1583 = vunpack.c.h.b16 %v1263
    %v1584 = vunpack.c.l.b16 %v1264
    %v1585 = vunpack.c.l.b16 %v1265
    %v1586 = vunpack.c.h.b16 %v1265
    %v1587 = vunpack.c.l.b16 %v1266
    %v1588 = vunpack.c.h.b16 %v1266
    %v1589 = vunpack.c.l.b16 %v1267
    %v1590 = vunpack.c.h.b16 %v1267
    %v1591 = vunpack.c.l.b16 %v1268
    %v1592 = vunpack.c.l.b16 %v1269
    %v1593 = vunpack.c.h.b16 %v1269
    %v1594 = vunpack.c.l.b16 %v1270
    %v1595 = vunpack.c.h.b16 %v1270
    %v1596 = vunpack.c.l.b16 %v1271
    %v1597 = vunpack.c.h.b16 %v1271
    %v1598 = vunpack.c.l.b16 %v1272
    %v1599 = vunpack.c.l.b16 %v1273
    %v1600 = vunpack.c.h.b16 %v1273
    %v1601 = vunpack.c.l.b16 %v1274
    %v1602 = vunpack.c.h.b16 %v1274
    %v1603 = vunpack.c.l.b16 %v1275
    %v1604 = vunpack.c.h.b16 %v1275
    %v1605 = vunpack.c.l.b16 %v1276
    %v1606 = vunpack.c.l.b16 %v1277
    %v1607 = vunpack.c.h.b16 %v1277
    %v1608 = vunpack.c.l.b16 %v1278
    %v1609 = vunpack.c.h.b16 %v1278
    %v1610 = vunpack.c.l.b16 %v1279
    %v1611 = vunpack.c.h.b16 %v1279
    %v1612 = vunpack.c.l.b16 %v1280
    %v1613 = vunpack.c.l.b16 %v1281
    %v1614 = vunpack.c.h.b16 %v1281
    %v1615 = vunpack.c.l.b16 %v1282
    %v1616 = vunpack.c.h.b16 %v1282
    %v1617 = vunpack.c.l.b16 %v1283
    %v1618 = vunpack.c.h.b16 %v1283
    %v1619 = vunpack.c.l.b16 %v1284
    %v1620 = vunpack.c.l.b16 %v1285
    %v1621 = vunpack.c.h.b16 %v1285
    %v1622 = vunpack.c.l.b16 %v1286
    %v1623 = vunpack.c.h.b16 %v1286
    %v1624 = vunpack.c.l.b16 %v1287
    %v1625 = vunpack.c.h.b16 %v1287
    %v1626 = vunpack.c.l.b16 %v1288
    %v1627 = vunpack.c.l.b16 %v1289
    %v1628 = vunpack.c.h.b16 %v1289
    %v1629 = vunpack.c.l.b16 %v1290
    %v1630 = vunpack.c.h.b16 %v1290
    %v1631 = vunpack.c.l.b16 %v1291
    %v1632 = vunpack.c.h.b16 %v1291
    %v1633 = vunpack.c.l.b16 %v1292
    %v1634 = vunpack.c.l.b16 %v1293
    %v1635 = vunpack.c.h.b16 %v1293
    %v1636 = vunpack.c.l.b16 %v1294
    %v1637 = vunpack.c.h.b16 %v1294
    %v1638 = vunpack.c.l.b16 %v1295
    %v1639 = vunpack.c.h.b16 %v1295
    %v1640 = vunpack.c.l.b16 %v1296
    %v1641 = vunpack.c.l.b16 %v1297
    %v1642 = vunpack.c.h.b16 %v1297
    %v1643 = vunpack.c.l.b16 %v1298
    %v1644 = vunpack.c.h.b16 %v1298
    %v1645 = vunpack.c.l.b16 %v1299
    %v1646 = vunpack.c.h.b16 %v1299
    %v1647 = vunpack.c.l.b16 %v1300
    %v1648 = vunpack.c.l.b16 %v1301
    %v1649 = vunpack.c.h.b16 %v1301
    %v1650 = vunpack.c.l.b16 %v1302
    %v1651 = vunpack.c.h.b16 %v1302
    %v1652 = vunpack.c.l.b16 %v1303
    %v1653 = vunpack.c.h.b16 %v1303
    %v1654 = vunpack.c.l.b16 %v1304
    %v1655 = vunpack.c.l.b16 %v1305
    %v1656 = vunpack.c.h.b16 %v1305
    %v1657 = vunpack.c.l.b16 %v1306
    %v1658 = vunpack.c.h.b16 %v1306
    %v1659 = vunpack.c.l.b16 %v1307
    %v1660 = vunpack.c.h.b16 %v1307
    %v1661 = vunpack.c.l.b16 %v1308
    %v1662 = vunpack.c.l.b16 %v1309
    %v1663 = vunpack.c.h.b16 %v1309
    %v1664 = vunpack.c.l.b16 %v1310
    %v1665 = vunpack.c.h.b16 %v1310
    %v1666 = vunpack.c.l.b16 %v1311
    %v1667 = vunpack.c.h.b16 %v1311
    %v1668 = vunpack.c.l.b16 %v1312
    %v1669 = vunpack.c.l.b16 %v1313
    %v1670 = vunpack.c.h.b16 %v1313
    %v1671 = vunpack.c.l.b16 %v1314
    %v1672 = vunpack.c.h.b16 %v1314
    %v1673 = vunpack.c.l.b16 %v1315
    %v1674 = vunpack.c.h.b16 %v1315
    %v1675 = vunpack.c.l.b16 %v1316
    %v1676 = vunpack.c.l.b16 %v1317
    %v1677 = vunpack.c.h.b16 %v1317
    %v1678 = vunpack.c.l.b16 %v1318
    %v1679 = vunpack.c.h.b16 %v1318
    %v1680 = vunpack.c.l.b16 %v1319
    %v1681 = vunpack.c.h.b16 %v1319
    %v1682 = vunpack.c.l.b16 %v1320
    %v1683 = vunpack.c.l.b16 %v1321
    %v1684 = vunpack.c.h.b16 %v1321
    %v1685 = vunpack.c.l.b16 %v1322
    %v1686 = vunpack.c.h.b16 %v1322
    %v1687 = vunpack.c.l.b16 %v1323
    %v1688 = vunpack.c.h.b16 %v1323
    %v1689 = vunpack.c.l.b16 %v1324
    %v1690 = vunpack.c.l.b16 %v1325
    %v1691 = vunpack.c.h.b16 %v1325
    %v1692 = vunpack.c.l.b16 %v1326
    %v1693 = vunpack.c.h.b16 %v1326
    %v1694 = vunpack.c.l.b16 %v1327
    %v1695 = vunpack.c.h.b16 %v1327
    %v1696 = vunpack.c.l.b16 %v1328
    %v1697 = vunpack.c.l.b16 %v1329
    %v1698 = vunpack.c.h.b16 %v1329
    %v1699 = vunpack.c.l.b16 %v1330
    %v1700 = vunpack.c.h.b16 %v1330
    %v1701 = vunpack.c.l.b16 %v1331
    %v1702 = vunpack.c.h.b16 %v1331
    %v1703 = vunpack.c.l.b16 %v1332
    %v1704 = vunpack.c.l.b16 %v1333
    %v1705 = vunpack.c.h.b16 %v1333
    %v1706 = vunpack.c.l.b16 %v1334
    %v1707 = vunpack.c.h.b16 %v1334
    %v1708 = vunpack.c.l.b16 %v1335
    %v1709 = vunpack.c.h.b16 %v1335
    %v1710 = vunpack.c.l.b16 %v1336
    %v1711 = vunpack.c.l.b16 %v1337
    %v1712 = vunpack.c.h.b16 %v1337
    %v1713 = vunpack.c.l.b16 %v1338
    %v1714 = vunpack.c.h.b16 %v1338
    %v1715 = vunpack.c.l.b16 %v1339
    %v1716 = vunpack.c.h.b16 %v1339
    %v1717 = vunpack.c.l.b16 %v1340
    %v1718 = vunpack.c.l.b16 %v1341
    %v1719 = vunpack.c.h.b16 %v1341
    %v1720 = vunpack.c.l.b16 %v1342
    %v1721 = vunpack.c.h.b16 %v1342
    %v1722 = vunpack.c.l.b16 %v1343
    %v1723 = vunpack.c.h.b16 %v1343
    %v1724 = vunpack.c.l.b16 %v1344
    %v1725 = vunpack.c.l.b16 %v1345
    %v1726 = vunpack.c.h.b16 %v1345
    %v1727 = vunpack.c.l.b16 %v1346
    %v1728 = vunpack.c.h.b16 %v1346
    %v1729 = vunpack.c.l.b16 %v1347
    %v1730 = vunpack.c.h.b16 %v1347
    %v1731 = vunpack.c.l.b16 %v1348
    %v1732 = vunpack.c.l.b16 %v1349
    %v1733 = vunpack.c.h.b16 %v1349
    %v1734 = vunpack.c.l.b16 %v1350
    %v1735 = vunpack.c.h.b16 %v1350
    %v1736 = vunpack.c.l.b16 %v1351
    %v1737 = vunpack.c.h.b16 %v1351
    %v1738 = vunpack.c.l.b16 %v1352
    %v1739 = vunpack.c.l.b16 %v1353
    %v1740 = vunpack.c.h.b16 %v1353
    %v1741 = vunpack.c.l.b16 %v1354
    %v1742 = vunpack.c.h.b16 %v1354
    %v1743 = vunpack.c.l.b16 %v1355
    %v1744 = vunpack.c.h.b16 %v1355
    %v1745 = vunpack.c.l.b16 %v1356
    %v1746 = vpack.c.b16 %v1529, %v1522
    %v1747 = vpack.c.b16 %v1530, %v1523
    %v1748 = vpack.c.b16 %v1531, %v1524
    %v1749 = vpack.c.b16 %v1532, %v1525
    %v1750 = vpack.c.b16 %v1533, %v1526
    %v1751 = vpack.c.b16 %v1534, %v1527
    %v1752 = vpack.c.b16 %v1535, %v1528
    %v1753 = vpack.c.b16 %v1543, %v1536
    %v1754 = vpack.c.b16 %v1544, %v1537
    %v1755 = vpack.c.b16 %v1545, %v1538
    %v1756 = vpack.c.b16 %v1546, %v1539
    %v1757 = vpack.c.b16 %v1547, %v1540
    %v1758 = vpack.c.b16 %v1548, %v1541
    %v1759 = vpack.c.b16 %v1549, %v1542
    %v1760 = vpack.c.b16 %v1557, %v1550
    %v1761 = vpack.c.b16 %v1558, %v1551
    %v1762 = vpack.c.b16 %v1559, %v1552
    %v1763 = vpack.c.b16 %v1560, %v1553
    %v1764 = vpack.c.b16 %v1561, %v1554
    %v1765 = vpack.c.b16 %v1562, %v1555
    %v1766 = vpack.c.b16 %v1563, %v1556
    %v1767 = vpack.c.b16 %v1571, %v1564
    %v1768 = vpack.c.b16 %v1572, %v1565
    %v1769 = vpack.c.b16 %v1573, %v1566
    %v1770 = vpack.c.b16 %v1574, %v1567
    %v1771 = vpack.c.b16 %v1575, %v1568
    %v1772 = vpack.c.b16 %v1576, %v1569
    %v1773 = vpack.c.b16 %v1577, %v1570
    %v1774 = vpack.c.b16 %v1585, %v1578
    %v1775 = vpack.c.b16 %v1586, %v1579
    %v1776 = vpack.c.b16 %v1587, %v1580
    %v1777 = vpack.c.b16 %v1588, %v1581
    %v1778 = vpack.c.b16 %v1589, %v1582
    %v1779 = vpack.c.b16 %v1590, %v1583
    %v1780 = vpack.c.b16 %v1591, %v1584
    %v1781 = vpack.c.b16 %v1599, %v1592
    %v1782 = vpack.c.b16 %v1600, %v1593
    %v1783 = vpack.c.b16 %v1601, %v1594
    %v1784 = vpack.c.b16 %v1602, %v1595
    %v1785 = vpack.c.b16 %v1603, %v1596
    %v1786 = vpack.c.b16 %v1604, %v1597
    %v1787 = vpack.c.b16 %v1605, %v1598
    %v1788 = vpack.c.b16 %v1613, %v1606
    %v1789 = vpack.c.b16 %v1614, %v1607
    %v1790 = vpack.c.b16 %v1615, %v1608
    %v1791 = vpack.c.b16 %v1616, %v1609
    %v1792 = vpack.c.b16 %v1617, %v1610
    %v1793 = vpack.c.b16 %v1618, %v1611
    %v1794 = vpack.c.b16 %v1619, %v1612
    %v1795 = vpack.c.b16 %v1627, %v1620
    %v1796 = vpack.c.b16 %v1628, %v1621
    %v1797 = vpack.c.b16 %v1629, %v1622
    %v1798 = vpack.c.b16 %v1630, %v1623
    %v1799 = vpack.c.b16 %v1631, %v1624
    %v1800 = vpack.c.b16 %v1632, %v1625
    %v1801 = vpack.c.b16 %v1633, %v1626
    %v1802 = vpack.c.b16 %v1641, %v1634
    %v1803 = vpack.c.b16 %v1642, %v1635
    %v1804 = vpack.c.b16 %v1643, %v1636
    %v1805 = vpack.c.b16 %v1644, %v1637
    %v1806 = vpack.c.b16 %v1645, %v1638
    %v1807 = vpack.c.b16 %v1646, %v1639
    %v1808 = vpack.c.b16 %v1647, %v1640
    %v1809 = vpack.c.b16 %v1655, %v1648
    %v1810 = vpack.c.b16 %v1656, %v1649
    %v1811 = vpack.c.b16 %v1657, %v1650
    %v1812 = vpack.c.b16 %v1658, %v1651
    %v1813 = vpack.c.b16 %v1659, %v1652
    %v1814 = vpack.c.b16 %v1660, %v1653
    %v1815 = vpack.c.b16 %v1661, %v1654
    %v1816 = vpack.c.b16 %v1669, %v1662
    %v1817 = vpack.c.b16 %v1670, %v1663
    %v1818 = vpack.c.b16 %v1671, %v1664
    %v1819 = vpack.c.b16 %v1672, %v1665
    %v1820 = vpack.c.b16 %v1673, %v1666
    %v1821 = vpack.c.b16 %v1674, %v1667
    %v1822 = vpack.c.b16 %v1675, %v1668
    %v1823 = vpack.c.b16 %v1683, %v1676
    %v1824 = vpack.c.b16 %v1684, %v1677
    %v1825 = vpack.c.b16 %v1685, %v1678
    %v1826 = vpack.c.b16 %v1686, %v1679
    %v1827 = vpack.c.b16 %v1687, %v1680
    %v1828 = vpack.c.b16 %v1688, %v1681
    %v1829 = vpack.c.b16 %v1689, %v1682
    %v1830 = vpack.c.b16 %v1697, %v1690
    %v1831 = vpack.c.b16 %v1698, %v1691
    %v1832 = vpack.c.b16 %v1699, %v1692
    %v1833 = vpack.c.b16 %v1700, %v1693
    %v1834 = vpack.c.b16 %v1701, %v1694
    %v1835 = vpack.c.b16 %v1702, %v1695
    %v1836 = vpack.c.b16 %v1703, %v1696
    %v1837 = vpack.c.b16 %v1711, %v1704
    %v1838 = vpack.c.b16 %v1712, %v1705
    %v1839 = vpack.c.b16 %v1713, %v1706
    %v1840 = vpack.c.b16 %v1714, %v1707
    %v1841 = vpack.c.b16 %v1715, %v1708
    %v1842 = vpack.c.b16 %v1716, %v1709
    %v1843 = vpack.c.b16 %v1717, %v1710
    %v1844 = vpack.c.b16 %v1725, %v1718
    %v1845 = vpack.c.b16 %v1726, %v1719
    %v1846 = vpack.c.b16 %v1727, %v1720
    %v1847 = vpack.c.b16 %v1728, %v1721
    %v1848 = vpack.c.b16 %v1729, %v1722
    %v1849 = vpack.c.b16 %v1730, %v1723
    %v1850 = vpack.c.b16 %v1731, %v1724
    %v1851 = vpack.c.b16 %v1739, %v1732
    %v1852 = vpack.c.b16 %v1740, %v1733
    %v1853 = vpack.c.b16 %v1741, %v1734
    %v1854 = vpack.c.b16 %v1742, %v1735
    %v1855 = vpack.c.b16 %v1743, %v1736
    %v1856 = vpack.c.b16 %v1744, %v1737
    %v1857 = vpack.c.b16 %v1745, %v1738
    %1970 = vmatprep.subr.bf16.mxu0 %v1796
    %1971 = vmatpush1.bf16.msra.mxu0 %v1795
    %1972 = vmatprep.subr.bf16.mxu0 %v1789
    %1973 = vmatpush1.bf16.msra.mxu0 %v1788
    %1974 = vmatprep.subr.bf16.mxu0 %v1782
    %1975 = vmatpush1.bf16.msra.mxu0 %v1781
    %1976 = vmatprep.subr.bf16.mxu0 %v1775
    %1977 = vmatpush1.bf16.msra.mxu0 %v1774
    %1978 = vmatprep.subr.bf16.mxu0 %v1768
    %1979 = vmatpush1.bf16.msra.mxu0 %v1767
    %1980 = vmatprep.subr.bf16.mxu0 %v1761
    %1981 = vmatpush1.bf16.msra.mxu0 %v1760
    %1982 = vmatprep.subr.bf16.mxu0 %v1754
    %1983 = vmatpush1.bf16.msra.mxu0 %v1753
    %1984 = vmatprep.subr.bf16.mxu0 %v1747
    %1985 = vmatpush1.bf16.msra.mxu0 %v1746
    %1986 = vmatprep.subr.bf16.mxu0 %v1852
    %1987 = vmatpush2.bf16.msra.mxu0 %v1851
    %1988 = vmatprep.subr.bf16.mxu0 %v1845
    %1989 = vmatpush2.bf16.msra.mxu0 %v1844
    %1990 = vmatprep.subr.bf16.mxu0 %v1838
    %1991 = vmatpush2.bf16.msra.mxu0 %v1837
    %1992 = vmatprep.subr.bf16.mxu0 %v1831
    %1993 = vmatpush2.bf16.msra.mxu0 %v1830
    %1994 = vmatprep.subr.bf16.mxu0 %v1824
    %1995 = vmatpush2.bf16.msra.mxu0 %v1823
    %1996 = vmatprep.subr.bf16.mxu0 %v1817
    %1997 = vmatpush2.bf16.msra.mxu0 %v1816
    %1998 = vmatprep.subr.bf16.mxu0 %v1810
    %1999 = vmatpush2.bf16.msra.mxu0 %v1809
    %2000 = vmatprep.subr.bf16.mxu0 %v1803
    %2001 = vmatpush2.bf16.msra.mxu0 %v1802
    %2002 = vmatprep.mubr.bf16.mxu0 %v1228
    %2003 = vmatmul.mubr.bf16.gmra.mxu0 %v1227
    %v2004 = vpop.f32.mrf.mxu0
    %v2005 = vadd.f32 %v1362, %v2004
    %v2006 = vpop.f32.mrf.mxu0
    %v2007 = vadd.f32 %v1366, %v2006
    %v2008 = vpop.f32.mrf.mxu0
    %v2009 = vpop.f32.mrf.mxu0
    %2010 = vdwg.mxu0
    %2011 = vmatprep.subr.bf16.mxu0 %v1798
    %2012 = vmatpush1.bf16.msra.mxu0 %v1797
    %2013 = vmatprep.subr.bf16.mxu0 %v1791
    %2014 = vmatpush1.bf16.msra.mxu0 %v1790
    %2015 = vmatprep.subr.bf16.mxu0 %v1784
    %2016 = vmatpush1.bf16.msra.mxu0 %v1783
    %2017 = vmatprep.subr.bf16.mxu0 %v1777
    %2018 = vmatpush1.bf16.msra.mxu0 %v1776
    %2019 = vmatprep.subr.bf16.mxu0 %v1770
    %2020 = vmatpush1.bf16.msra.mxu0 %v1769
    %2021 = vmatprep.subr.bf16.mxu0 %v1763
    %2022 = vmatpush1.bf16.msra.mxu0 %v1762
    %2023 = vmatprep.subr.bf16.mxu0 %v1756
    %2024 = vmatpush1.bf16.msra.mxu0 %v1755
    %2025 = vmatprep.subr.bf16.mxu0 %v1749
    %2026 = vmatpush1.bf16.msra.mxu0 %v1748
    %2027 = vmatprep.subr.bf16.mxu0 %v1854
    %2028 = vmatpush2.bf16.msra.mxu0 %v1853
    %2029 = vmatprep.subr.bf16.mxu0 %v1847
    %2030 = vmatpush2.bf16.msra.mxu0 %v1846
    %2031 = vmatprep.subr.bf16.mxu0 %v1840
    %2032 = vmatpush2.bf16.msra.mxu0 %v1839
    %2033 = vmatprep.subr.bf16.mxu0 %v1833
    %2034 = vmatpush2.bf16.msra.mxu0 %v1832
    %2035 = vmatprep.subr.bf16.mxu0 %v1826
    %2036 = vmatpush2.bf16.msra.mxu0 %v1825
    %2037 = vmatprep.subr.bf16.mxu0 %v1819
    %2038 = vmatpush2.bf16.msra.mxu0 %v1818
    %2039 = vmatprep.subr.bf16.mxu0 %v1812
    %2040 = vmatpush2.bf16.msra.mxu0 %v1811
    %2041 = vmatprep.subr.bf16.mxu0 %v1805
    %2042 = vmatpush2.bf16.msra.mxu0 %v1804
    %2043 = vmatprep.mubr.bf16.mxu0 %v1228
    %2044 = vmatmul.mubr.bf16.gmra.mxu0 %v1227
    %v2045 = vpop.f32.mrf.mxu0
    %v2046 = vadd.f32 %v1370, %v2045
    %v2047 = vpop.f32.mrf.mxu0
    %v2048 = vadd.f32 %v1374, %v2047
    %v2049 = vpop.f32.mrf.mxu0
    %v2050 = vpop.f32.mrf.mxu0
    %2051 = vdwg.mxu0
    %2052 = vmatprep.subr.bf16.mxu0 %v1800
    %2053 = vmatpush1.bf16.msra.mxu0 %v1799
    %2054 = vmatprep.subr.bf16.mxu0 %v1793
    %2055 = vmatpush1.bf16.msra.mxu0 %v1792
    %2056 = vmatprep.subr.bf16.mxu0 %v1786
    %2057 = vmatpush1.bf16.msra.mxu0 %v1785
    %2058 = vmatprep.subr.bf16.mxu0 %v1779
    %2059 = vmatpush1.bf16.msra.mxu0 %v1778
    %2060 = vmatprep.subr.bf16.mxu0 %v1772
    %2061 = vmatpush1.bf16.msra.mxu0 %v1771
    %2062 = vmatprep.subr.bf16.mxu0 %v1765
    %2063 = vmatpush1.bf16.msra.mxu0 %v1764
    %2064 = vmatprep.subr.bf16.mxu0 %v1758
    %2065 = vmatpush1.bf16.msra.mxu0 %v1757
    %2066 = vmatprep.subr.bf16.mxu0 %v1751
    %2067 = vmatpush1.bf16.msra.mxu0 %v1750
    %2068 = vmatprep.subr.bf16.mxu0 %v1856
    %2069 = vmatpush2.bf16.msra.mxu0 %v1855
    %2070 = vmatprep.subr.bf16.mxu0 %v1849
    %2071 = vmatpush2.bf16.msra.mxu0 %v1848
    %2072 = vmatprep.subr.bf16.mxu0 %v1842
    %2073 = vmatpush2.bf16.msra.mxu0 %v1841
    %2074 = vmatprep.subr.bf16.mxu0 %v1835
    %2075 = vmatpush2.bf16.msra.mxu0 %v1834
    %2076 = vmatprep.subr.bf16.mxu0 %v1828
    %2077 = vmatpush2.bf16.msra.mxu0 %v1827
    %2078 = vmatprep.subr.bf16.mxu0 %v1821
    %2079 = vmatpush2.bf16.msra.mxu0 %v1820
    %2080 = vmatprep.subr.bf16.mxu0 %v1814
    %2081 = vmatpush2.bf16.msra.mxu0 %v1813
    %2082 = vmatprep.subr.bf16.mxu0 %v1807
    %2083 = vmatpush2.bf16.msra.mxu0 %v1806
    %2084 = vmatprep.mubr.bf16.mxu0 %v1228
    %2085 = vmatmul.mubr.bf16.gmra.mxu0 %v1227
    %v2086 = vpop.f32.mrf.mxu0
    %v2087 = vadd.f32 %v1378, %v2086
    %v2088 = vpop.f32.mrf.mxu0
    %v2089 = vadd.f32 %v1382, %v2088
    %v2090 = vpop.f32.mrf.mxu0
    %v2091 = vpop.f32.mrf.mxu0
    %2092 = vdwg.mxu0
    %2093 = vmatprep.subr.bf16.mxu0 0
    %2094 = vmatpush1.bf16.msra.mxu0 %v1801
    %2095 = vmatprep.subr.bf16.mxu0 0
    %2096 = vmatpush1.bf16.msra.mxu0 %v1794
    %2097 = vmatprep.subr.bf16.mxu0 0
    %2098 = vmatpush1.bf16.msra.mxu0 %v1787
    %2099 = vmatprep.subr.bf16.mxu0 0
    %2100 = vmatpush1.bf16.msra.mxu0 %v1780
    %2101 = vmatprep.subr.bf16.mxu0 0
    %2102 = vmatpush1.bf16.msra.mxu0 %v1773
    %2103 = vmatprep.subr.bf16.mxu0 0
    %2104 = vmatpush1.bf16.msra.mxu0 %v1766
    %2105 = vmatprep.subr.bf16.mxu0 0
    %2106 = vmatpush1.bf16.msra.mxu0 %v1759
    %2107 = vmatprep.subr.bf16.mxu0 0
    %2108 = vmatpush1.bf16.msra.mxu0 %v1752
    %2109 = vmatprep.subr.bf16.mxu0 0
    %2110 = vmatpush2.bf16.msra.mxu0 %v1857
    %2111 = vmatprep.subr.bf16.mxu0 0
    %2112 = vmatpush2.bf16.msra.mxu0 %v1850
    %2113 = vmatprep.subr.bf16.mxu0 0
    %2114 = vmatpush2.bf16.msra.mxu0 %v1843
    %2115 = vmatprep.subr.bf16.mxu0 0
    %2116 = vmatpush2.bf16.msra.mxu0 %v1836
    %2117 = vmatprep.subr.bf16.mxu0 0
    %2118 = vmatpush2.bf16.msra.mxu0 %v1829
    %2119 = vmatprep.subr.bf16.mxu0 0
    %2120 = vmatpush2.bf16.msra.mxu0 %v1822
    %2121 = vmatprep.subr.bf16.mxu0 0
    %2122 = vmatpush2.bf16.msra.mxu0 %v1815
    %2123 = vmatprep.subr.bf16.mxu0 0
    %2124 = vmatpush2.bf16.msra.mxu0 %v1808
    %2125 = vmatprep.mubr.bf16.mxu0 %v1228
    %2126 = vmatmul.mubr.bf16.gmra.mxu0 %v1227
    %v2127 = vpop.f32.mrf.mxu0
    %v2128 = vadd.f32 %v1386, %v2127
    %v2129 = vpop.f32.mrf.mxu0
    %v2130 = vpop.f32.mrf.mxu0
    %v2131 = vpop.f32.mrf.mxu0
    %2132 = vdwg.mxu0
    %v2133 = vtanh.pop %v2005
    %v2134 = vtanh.pop %v2007
    %v2135 = vtanh.pop %v2046
    %v2136 = vtanh.pop %v2048
    %v2137 = vtanh.pop %v2087
    %v2138 = vtanh.pop %v2089
    %v2139 = vtanh.pop %v2128
    %v2140 = vpack.c.bf16 %v2133, %v2133
    %v2141 = vpack.c.bf16 %v2134, %v2134
    %v2142 = vpack.c.bf16 %v2135, %v2135
    %v2143 = vpack.c.bf16 %v2136, %v2136
    %v2144 = vpack.c.bf16 %v2137, %v2137
    %v2145 = vpack.c.bf16 %v2138, %v2138
    %v2146 = vpack.c.bf16 %v2139, %v2139
    %v2154 = vunpack.c.l.b16 %v2140
    %v2155 = vunpack.c.l.b16 %v2141
    %v2156 = vunpack.c.l.b16 %v2142
    %v2157 = vunpack.c.l.b16 %v2143
    %v2158 = vunpack.c.l.b16 %v2144
    %v2159 = vunpack.c.l.b16 %v2145
    %v2160 = vunpack.c.l.b16 %v2146
    %v2161 = vpack.c.b16 %v2155, %v2154
    %v2162 = vpack.c.b16 %v2157, %v2156
    %v2163 = vpack.c.b16 %v2159, %v2158
    %v2164 = vpack.c.b16 %v2160, %v2160
    %2169 = vst [vmem:[#allocation2] sm:$0xff] %v2161
    %2170 = vst [vmem:[#allocation2 + $0x8] sm:$0xff] %v2162
    %2171 = vst [vmem:[#allocation2 + $0x10] sm:$0xff] %v2163
    %vm2172 = vcmask 125952
    %2173 = vst.msk [vmem:[#allocation2 + $0x18] sm:$0xf] %vm2172, %v2164
    // Predicated region
    $region54: #{autoencoder_forward.1} parent=1 // pred_check
      _
    $region55: #{autoencoder_forward.1} parent=1 // pred_check_branch
      %2175 = sbr.rel (0) target = $region57
    $region56: #{autoencoder_forward.1} parent=1 // pred_region
      _
    $region57: #{autoencoder_forward.1} parent=1 // pred_fallthru
      _
    // Predicated region
    $region58: #{autoencoder_forward.1} parent=1 // pred_check
      _
    $region59: #{autoencoder_forward.1} parent=1 // pred_check_branch
      %2177 = sbr.rel (0) target = $region61
    $region60: #{autoencoder_forward.1} parent=1 // pred_region
      %s2179 = ssub.s32 448, 448
      %2180 = vsyncadd [#allocation3], %s2179
      %s2182 = sshll.u32 [#allocation2], 4
      %s2183 = int_to_ptr.vmem [resolvable:$true] %s2182
      %2185 = dma.vmem_to_hbm [thread:$0]  %s2183, 448, %s14, [#allocation3]
    $region61: #{autoencoder_forward.1} parent=1 // pred_fallthru
      _
    // Predicated region
    $region62: #{autoencoder_forward.1} parent=1 // pred_check
      _
    $region63: #{autoencoder_forward.1} parent=1 // pred_check_branch
      %2187 = sbr.rel (0) target = $region65
    $region64: #{autoencoder_forward.1} parent=1 // pred_region
      _
    $region65: #{autoencoder_forward.1} parent=1 // pred_fallthru
      _
    // Predicated region
    $region66: #{autoencoder_forward.1} parent=1 // pred_check
      _
    $region67: #{autoencoder_forward.1} parent=1 // pred_check_branch
      %2189 = sbr.rel (0) target = $region69
    $region68: #{autoencoder_forward.1} parent=1 // pred_region
      %2190 = dma.done [#allocation3], 448
    $region69: #{autoencoder_forward.1} parent=1 // pred_fallthru
      _
    %2191 = vsyncpa [#allocation3], 1

</llo_original>
